<compile_context>
chip_gen: v5e
topology: v5e:2x2
jax: 0.10.0
libtpu: 0.0.40
codegen_flags: <defaults>
</compile_context>

<pallas_src>
import math
from functools import partial

import jax
import jax.numpy as jnp
from jax.experimental import pallas as pl
from jax.experimental.pallas import tpu as pltpu


def compute_hough_parameters(H, W, theta_res=1.0, rho_res=1.0):
    numangle = int(math.ceil(180.0 / theta_res))
    D = math.sqrt((H - 1) ** 2 + (W - 1) ** 2)
    numrho = int(math.ceil(2.0 * D / rho_res) + 1)
    return numangle, numrho


def _round_up(x, m):
    return ((x + m - 1) // m) * m


def _make_rho_index(H, W, numangle, numrho, rho_res):
    """rho-bin index for every (angle, pixel) pair. Plain-JAX glue. (A, P) int32."""
    theta = jnp.arange(numangle, dtype=jnp.float32) * (math.pi / numangle)
    cos_t = jnp.cos(theta)                                       # (A,)
    sin_t = jnp.sin(theta)                                       # (A,)
    ys, xs = jnp.meshgrid(jnp.arange(H, dtype=jnp.float32),
                          jnp.arange(W, dtype=jnp.float32), indexing="ij")
    xx = (xs - (W // 2)).reshape(-1)                             # (P,)
    yy = (ys - (H // 2)).reshape(-1)                             # (P,)
    rho = (xx[None, :] * cos_t[:, None] + yy[None, :] * sin_t[:, None]) / rho_res
    return jnp.round(rho).astype(jnp.int32) + (numrho // 2)      # (A, P)


def _dht_kernel(rho_ref, feat_ref, out_ref):
    # rho_ref:  (A_TILE, P_TILE)           int32  -- P lane-major
    # feat_ref: (NC_TILE, P_TILE)          f32
    # out_ref:  (NC_TILE, A_TILE * R_pad)  f32    -- lane-dense, accumulates over P
    @pl.when(pl.program_id(2) == 0)
    def _():
        out_ref[...] = jnp.zeros_like(out_ref)

    a_tile, p_tile = rho_ref.shape
    r_pad = out_ref.shape[1] // a_tile

    rho = rho_ref[...]                                               # (A_TILE, P_TILE)
    # rho-bin index along sublanes, broadcast along lanes.
    bins = jax.lax.broadcasted_iota(jnp.int32, (r_pad, p_tile), 0)   # (R_pad, P_TILE)
    onehot = (rho[:, None, :] == bins[None, :, :]).astype(jnp.float32)
    # (A_TILE, R_pad, P_TILE) -> (A_TILE*R_pad, P_TILE): collapse of leading
    # dims into sublanes (R_pad % 8 == 0), layout-preserving.
    onehot2d = onehot.reshape(a_tile * r_pad, p_tile)

    # Contract on the shared P (lane) axis: feat (NC,P) x onehot (A*R,P)^T.
    votes = jax.lax.dot_general(
        feat_ref[...], onehot2d,
        dimension_numbers=(((1,), (1,)), ((), ())),
        preferred_element_type=jnp.float32)                          # (NC_TILE, A_TILE*R_pad)
    out_ref[...] += votes


def _choose_tiles(NC, P, numangle, numrho):
    """Tile sizes honoring (8,128) layout, MXU alignment and a VMEM budget."""
    R_pad = _round_up(numrho, 16)
    # minimal angle-batch granularity so A_TILE * R_pad is a multiple of 128
    a_step = 128 // math.gcd(R_pad, 128)

    NC_TILE = min(_round_up(NC, 8), 256)
    P_TILE = min(_round_up(P, 128), 2048)

    # Grow the angle batch: fewer grid steps, wider lane-dense MXU output, but
    # cap the output-tile width and the wasted (padded) angles.
    A_TILE = a_step
    while (2 * A_TILE * R_pad <= 2048
           and _round_up(numangle, 2 * A_TILE) - numangle
               <= max(numangle // 4, a_step)):
        A_TILE *= 2

    def vmem_bytes(nc_t, a_t, p_t):
        w = a_t * R_pad
        return 4 * (2 * nc_t * p_t      # feat tile (double-buffered)
                    + 2 * a_t * p_t     # rho tile  (double-buffered)
                    + 2 * nc_t * w      # resident output accumulator block
                    + w * p_t           # in-kernel one-hot temp
                    + nc_t * w)         # matmul result temp

    BUDGET = 28 * 1024 * 1024
    while vmem_bytes(NC_TILE, A_TILE, P_TILE) > BUDGET and P_TILE > 512:
        P_TILE = _round_up(P_TILE // 2, 128)
    while vmem_bytes(NC_TILE, A_TILE, P_TILE) > BUDGET and NC_TILE > 64:
        NC_TILE = _round_up(NC_TILE // 2, 8)
    while vmem_bytes(NC_TILE, A_TILE, P_TILE) > BUDGET and A_TILE > a_step:
        A_TILE //= 2
    while vmem_bytes(NC_TILE, A_TILE, P_TILE) > BUDGET and P_TILE > 128:
        P_TILE = _round_up(P_TILE // 2, 128)

    return R_pad, A_TILE, NC_TILE, P_TILE


def dht_forward(feat, theta_res=1.0, rho_res=1.0):
    """feat: [N, C, H, W] f32 -> [N, C, numangle, numrho] f32."""
    N, C, H, W = feat.shape
    numangle, numrho = compute_hough_parameters(H, W, theta_res, rho_res)

    NC = N * C
    P = H * W

    R_pad, A_TILE, NC_TILE, P_TILE = _choose_tiles(NC, P, numangle, numrho)
    A_pad = _round_up(numangle, A_TILE)
    NC_pad = _round_up(NC, NC_TILE)
    P_pad = _round_up(P, P_TILE)

    rho_idx = _make_rho_index(H, W, numangle, numrho, rho_res)       # (A, P)
    # padded pixels / padded angles get bin -1 -> match no rho bin -> no votes
    rho_idx = jnp.pad(rho_idx, ((0, A_pad - numangle), (0, P_pad - P)),
                      constant_values=-1)                            # (A_pad, P_pad)

    feat_flat = feat.reshape(NC, P).astype(jnp.float32)
    feat_flat = jnp.pad(feat_flat, ((0, NC_pad - NC), (0, P_pad - P)))

    grid = (NC_pad // NC_TILE, A_pad // A_TILE, P_pad // P_TILE)

    out2d = pl.pallas_call(
        _dht_kernel,
        out_shape=jax.ShapeDtypeStruct((NC_pad, A_pad * R_pad), jnp.float32),
        grid_spec=pltpu.PrefetchScalarGridSpec(
            num_scalar_prefetch=0,
            grid=grid,
            in_specs=[
                pl.BlockSpec((A_TILE, P_TILE), lambda n, a, p: (a, p)),
                pl.BlockSpec((NC_TILE, P_TILE), lambda n, a, p: (n, p)),
            ],
            out_specs=pl.BlockSpec((NC_TILE, A_TILE * R_pad),
                                   lambda n, a, p: (n, a)),
        ),
        compiler_params=pltpu.CompilerParams(
            dimension_semantics=("parallel", "parallel", "arbitrary"),
            vmem_limit_bytes=48 * 1024 * 1024,
        ),
    )(rho_idx, feat_flat)

    # Free (contiguous) reshape + slice; output already in NC-major layout,
    # no HBM transpose needed.
    out = out2d.reshape(NC_pad, A_pad, R_pad)[:NC, :numangle, :numrho]
    return out.reshape(N, C, numangle, numrho)


class DHT:
    """JAX/Pallas counterpart of the PyTorch DHT module (no learnable params)."""

    def __init__(self, H, W, theta_res=1.0, rho_res=1.0):
        self.numangle, self.numrho = compute_hough_parameters(H, W, theta_res, rho_res)
        print(f'=> [C_dht_res] computed numangle={self.numangle}, '
              f'numrho={self.numrho} from (H={H},W={W})')
        self.theta_res = theta_res
        self.rho_res = rho_res
        self._fwd = jax.jit(partial(dht_forward, theta_res=theta_res, rho_res=rho_res))

    def __call__(self, feat):
        return self._fwd(feat)


def _dht_reference(feat, theta_res=1.0, rho_res=1.0):
    """Pure-JAX reference (same vote formula) for correctness checking."""
    N, C, H, W = feat.shape
    numangle, numrho = compute_hough_parameters(H, W, theta_res, rho_res)
    rho_idx = _make_rho_index(H, W, numangle, numrho, rho_res)   # (A, P)
    onehot = jax.nn.one_hot(rho_idx, numrho, dtype=jnp.float32)  # (A, P, R)
    feat_flat = feat.reshape(N * C, H * W).astype(jnp.float32)   # (NC, P)
    out = jnp.einsum("np,apr->nar", feat_flat, onehot)           # (NC, A, R)
    return out.reshape(N, C, numangle, numrho)


if __name__ == "__main__":
    N, C, H, W = 2, 4, 16, 16
    key = jax.random.PRNGKey(0)
    feat = jax.random.normal(key, (N, C, H, W), dtype=jnp.float32)

    dht = DHT(H, W, theta_res=1.0, rho_res=1.0)
    out = jax.block_until_ready(dht(feat))
    assert out.shape == (N, C, dht.numangle, dht.numrho), out.shape

    ref = jax.block_until_ready(_dht_reference(feat))
    assert jnp.allclose(out, ref, atol=1e-4, rtol=1e-4), \
        float(jnp.max(jnp.abs(out - ref)))

    print("KERNEL_OK")
</pallas_src>

<mosaic_0001>
module attributes {stable_mosaic.version = 11 : i64} {
  func.func @_dht_kernel(%arg0: i32, %arg1: i32, %arg2: i32, %arg3: memref<32x256xi32, #tpu.memory_space<vmem>>, %arg4: memref<8x256xf32, #tpu.memory_space<vmem>>, %arg5: memref<8x1536xf32, #tpu.memory_space<vmem>>) attributes {dimension_semantics = [#tpu.dimension_semantics<parallel>, #tpu.dimension_semantics<parallel>, #tpu.dimension_semantics<arbitrary>], iteration_bounds = array<i64: 1, 6, 1>, scalar_prefetch = 0 : i64, scratch_operands = 0 : i64, tpu.core_type = #tpu.core_type<tc>, window_params = [{transform_indices = @transform_0, window_bounds = array<i64: 32, 256>}, {transform_indices = @transform_1, window_bounds = array<i64: 8, 256>}, {transform_indices = @transform_2, window_bounds = array<i64: 8, 1536>}]} {
    %c0_i32 = arith.constant 0 : i32
    %0 = arith.cmpi eq, %arg2, %c0_i32 : i32
    %1 = arith.extui %0 : i1 to i32
    %c0_i32_0 = arith.constant 0 : i32
    %2 = arith.cmpi ne, %1, %c0_i32_0 : i32
    scf.if %2 {
      %cst_8 = arith.constant 0.000000e+00 : f32
      %18 = vector.broadcast %cst_8 : f32 to vector<8x1536xf32>
      %c0_9 = arith.constant 0 : index
      %c0_10 = arith.constant 0 : index
      %19 = vector.load %arg5[%c0_9, %c0_10] : memref<8x1536xf32, #tpu.memory_space<vmem>>, vector<8x1536xf32>
      tpu.vector_store %arg5[%c0_9, %c0_10], %18 {strides = array<i32>} : memref<8x1536xf32, #tpu.memory_space<vmem>>, vector<8x1536xf32>,
    } else {
    }
    %c0 = arith.constant 0 : index
    %c0_1 = arith.constant 0 : index
    %3 = vector.load %arg3[%c0, %c0_1] : memref<32x256xi32, #tpu.memory_space<vmem>>, vector<32x256xi32>
    %4 = tpu.iota {dimensions = array<i32: 0>} : vector<48x256xi32>
    %5 = vector.shape_cast %3 : vector<32x256xi32> to vector<32x1x256xi32>
    %6 = vector.shape_cast %4 : vector<48x256xi32> to vector<1x48x256xi32>
    %7 = vector.broadcast %5 : vector<32x1x256xi32> to vector<32x48x256xi32>
    %8 = vector.broadcast %6 : vector<1x48x256xi32> to vector<32x48x256xi32>
    %9 = arith.cmpi eq, %7, %8 : vector<32x48x256xi32>
    %10 = arith.extui %9 : vector<32x48x256xi1> to vector<32x48x256xi32>
    %11 = arith.sitofp %10 : vector<32x48x256xi32> to vector<32x48x256xf32>
    %12 = vector.shape_cast %11 : vector<32x48x256xf32> to vector<1536x256xf32>
    %c0_2 = arith.constant 0 : index
    %c0_3 = arith.constant 0 : index
    %13 = vector.load %arg4[%c0_2, %c0_3] : memref<8x256xf32, #tpu.memory_space<vmem>>, vector<8x256xf32>
    %cst = arith.constant dense<0.000000e+00> : vector<8x1536xf32>
    %14 = tpu.matmul %13, %12, %cst {dimension_numbers = #tpu.dot_dimension_numbers<[1], [1], [0], [0], [0, 0, 1, 0], [], []>} : vector<8x256xf32>, vector<1536x256xf32>, vector<8x1536xf32> -> vector<8x1536xf32>
    %c0_4 = arith.constant 0 : index
    %c0_5 = arith.constant 0 : index
    %15 = vector.load %arg5[%c0_4, %c0_5] : memref<8x1536xf32, #tpu.memory_space<vmem>>, vector<8x1536xf32>
    %16 = arith.addf %15, %14 : vector<8x1536xf32>
    %c0_6 = arith.constant 0 : index
    %c0_7 = arith.constant 0 : index
    %17 = vector.load %arg5[%c0_6, %c0_7] : memref<8x1536xf32, #tpu.memory_space<vmem>>, vector<8x1536xf32>
    tpu.vector_store %arg5[%c0_6, %c0_7], %16 {strides = array<i32>} : memref<8x1536xf32, #tpu.memory_space<vmem>>, vector<8x1536xf32>,
    return
  }
  func.func @transform_0(%arg0: i32, %arg1: i32, %arg2: i32) -> (i32, i32) {
    %c0_i32 = arith.constant 0 : i32
    return %arg1, %arg2 : i32, i32
  }
  func.func @transform_1(%arg0: i32, %arg1: i32, %arg2: i32) -> (i32, i32) {
    %c0_i32 = arith.constant 0 : i32
    return %arg0, %arg2 : i32, i32
  }
  func.func @transform_2(%arg0: i32, %arg1: i32, %arg2: i32) -> (i32, i32) {
    %c0_i32 = arith.constant 0 : i32
    return %arg0, %arg1 : i32, i32
  }
}

</mosaic_0001>

<llo_original>
// kernel: mul.26
$region0: #{mul.26}
  %s0 = inlined_call_operand.vmem [shape: f32[16,16], index: 0, kind: input, shape index: {}]
  %s1 = inlined_call_operand.vmem [shape: f32[256], index: 1, kind: output, shape index: {}]
  $region1: #{mul.26} parent=0
    #allocation0 [shape = 'u8[4096]{0}', space=vmem, size = 0x1000, scoped, tag = 'scoped mem for output reshape']
    %s2 = smov 3
    %v3 = vld [vmem:[%s0] ss:$8 sm:%s2]
    %vm4 = vcmask 130048
    %5 = vst.msk [vmem:[#allocation0] sm:$0x3] %vm4, %v3
    %s6 = scalar_lea.vmem %s0, 7
    %s7 = smov 3
    %v8 = vld [vmem:[%s6] ss:$8 sm:%s7]
    %9 = vrot.lane.b32.xlu0 %v8, 112
    %v10 = vpop.permute.xlu0 %9
    %vm11 = vcmask 1048448
    %12 = vst.msk [vmem:[#allocation0] sm:$0x3] %vm11, %v10
    %s13 = scalar_lea.vmem %s0, 6
    %s14 = smov 3
    %v15 = vld [vmem:[%s13] ss:$8 sm:%s14]
    %16 = vrot.lane.b32.xlu0 %v15, 96
    %v17 = vpop.permute.xlu0 %16
    %vm18 = vcmask 917248
    %19 = vst.msk [vmem:[#allocation0] sm:$0x3] %vm18, %v17
    %s20 = scalar_lea.vmem %s0, 5
    %s21 = smov 3
    %v22 = vld [vmem:[%s20] ss:$8 sm:%s21]
    %23 = vrot.lane.b32.xlu0 %v22, 80
    %v24 = vpop.permute.xlu0 %23
    %vm25 = vcmask 786048
    %26 = vst.msk [vmem:[#allocation0] sm:$0x3] %vm25, %v24
    %s27 = scalar_lea.vmem %s0, 4
    %s28 = smov 3
    %v29 = vld [vmem:[%s27] ss:$8 sm:%s28]
    %30 = vrot.lane.b32.xlu0 %v29, 64
    %v31 = vpop.permute.xlu0 %30
    %vm32 = vcmask 654848
    %33 = vst.msk [vmem:[#allocation0] sm:$0x3] %vm32, %v31
    %s34 = scalar_lea.vmem %s0, 3
    %s35 = smov 3
    %v36 = vld [vmem:[%s34] ss:$8 sm:%s35]
    %37 = vrot.lane.b32.xlu0 %v36, 48
    %v38 = vpop.permute.xlu0 %37
    %vm39 = vcmask 523648
    %40 = vst.msk [vmem:[#allocation0] sm:$0x3] %vm39, %v38
    %s41 = scalar_lea.vmem %s0, 2
    %s42 = smov 3
    %v43 = vld [vmem:[%s41] ss:$8 sm:%s42]
    %44 = vrot.lane.b32.xlu0 %v43, 32
    %v45 = vpop.permute.xlu0 %44
    %vm46 = vcmask 392448
    %47 = vst.msk [vmem:[#allocation0] sm:$0x3] %vm46, %v45
    %s48 = scalar_lea.vmem %s0, 1
    %s49 = smov 3
    %v50 = vld [vmem:[%s48] ss:$8 sm:%s49]
    %51 = vrot.lane.b32.xlu0 %v50, 16
    %v52 = vpop.permute.xlu0 %51
    %vm53 = vcmask 261248
    %54 = vst.msk [vmem:[#allocation0] sm:$0x3] %vm53, %v52
    %s56 = ssub.s32 4, 1
    %v57 = vld [vmem:[#allocation0] sm:%s56]
    %s59 = ssub.s32 4, 1
    %60 = vst [vmem:[%s1] sm:%s59] %v57

// kernel: dht_forward.1
$region0: #{dht_forward.1}
  #allocation0 [shape = 'u32[]', space=smem, size = 0x4, offset = 0x4, fixed_abs, tag = 'smem constant byte address 0x4 - core index']
  #allocation1 [shape = 'u32[72,128]{1,0:T(1,128)}', space=vmem, size = 0x9000, scoped, tag = 'internal scratch']
  %s0 = inlined_call_operand.vmem [shape: s32[192,256], index: 0, kind: input, shape index: {}]
  %s1 = inlined_call_operand.vmem [shape: f32[8,256], index: 1, kind: input, shape index: {}]
  %s2 = inlined_call_operand.vmem [shape: f32[8,9216], index: 2, kind: output, shape index: {}]
  %s3 = sld [smem:[#allocation0]]
  $region45: #{dht_forward.1} parent=0
    _
  %s5 = ssub.s32 1, %s3
  %s6 = scalar_select 0, %s5, %s3
  loop: start=0, step=1, limit=8
  $region2: #{dht_forward.1} parent=0 // loop_pre_header
    _
  $region3: #{dht_forward.1} parent=0 // loop_header
    %s8 = sphi 0, %s12
    %p9 = scmp.ge.s32.totalorder %s8, 8
    %s15 = sphi 0, %s34
    %s16 = sphi 0, %s30
    %s17 = sphi 0, %s26
    %s18 = sphi 0, %s15
    %s19 = sphi 0, %s16
    %s20 = sphi 0, %s17
    %s21 = sphi 0, %s18
    %s22 = sphi 0, %s19
    %s23 = sphi 0, %s20
    %s39 = sphi 0, %s41
    %s42 = sphi 0, %s39
    %s43 = sphi 0, %s42
    %s59 = sphi 0, %s43
    %s67 = sphi 0, %s69
    %s70 = sphi 0, %s67
    %s71 = sphi 0, %s70
    %s87 = sphi 0, %s71
    %s95 = sphi 0, %s97
    %s98 = sphi 0, %s95
    %s99 = sphi 0, %s98
    %s115 = sphi 0, %s99
  $region4: #{dht_forward.1} parent=0 // loop_header_branch
    %11 = sbr.rel (%p9) target = $region8
  $region5: #{dht_forward.1} parent=0 // loop_body
    %s13 = ssub.s32 %s8, 1
    %s14 = ssub.s32 %s8, 2
    %s24 = sadd.s32 1, %s17
    %p25 = scmp.ge.s32.totalorder %s24, 1
    %s26 = scalar_select %p25, 0, %s24
    %s27 = sadd.s32 1, %s16
    %s28 = scalar_select %p25, %s27, %s16
    %p29 = scmp.ge.s32.totalorder %s28, 6
    %s30 = scalar_select %p29, 0, %s28
    %s31 = sadd.s32 1, %s15
    %s32 = scalar_select %p29, %s31, %s15
    %p33 = scmp.ge.s32.totalorder %s32, 1
    %s34 = scalar_select %p33, 0, %s32
    %s35 = ssub.s32 %s16, %s30
    %s36 = ssub.s32 %s17, %s26
    %s37 = sor.u32 %s35, %s36
    %p38 = scmp.eq.s32.totalorder %s37, 0
    %s40 = sadd.s32 %s39, 1
    %s41 = scalar_select %p38, %s39, %s40
    %p44 = pneg %p38
    %p45 = scmp.eq.s32.totalorder %s8, 5
    %p46 = por %p44, %p45
    %p47 = scmp.ne.s32.totalorder %s39, %s42
    %p48 = scmp.eq.s32.totalorder %s8, 0
    %p49 = por %p47, %p48
    %p50 = scmp.ne.s32.totalorder %s39, %s42
    %p51 = scmp.eq.s32.totalorder %s13, 5
    %p52 = por %p50, %p51
    %p53 = scmp.ne.s32.totalorder %s42, %s43
    %p54 = scmp.eq.s32.totalorder %s13, 0
    %p55 = por %p53, %p54
    %p56 = scmp.ne.s32.totalorder %s42, %s43
    %p57 = scmp.eq.s32.totalorder %s14, 5
    %p58 = por %p56, %p57
    %p60 = scmp.ne.s32.totalorder %s43, %s59
    %p61 = scmp.eq.s32.totalorder %s14, 0
    %p62 = por %p60, %p61
    %s63 = ssub.s32 %s15, %s34
    %s64 = ssub.s32 %s17, %s26
    %s65 = sor.u32 %s63, %s64
    %p66 = scmp.eq.s32.totalorder %s65, 0
    %s68 = sadd.s32 %s67, 1
    %s69 = scalar_select %p66, %s67, %s68
    %p72 = pneg %p66
    %p73 = scmp.eq.s32.totalorder %s8, 5
    %p74 = por %p72, %p73
    %p75 = scmp.ne.s32.totalorder %s67, %s70
    %p76 = scmp.eq.s32.totalorder %s8, 0
    %p77 = por %p75, %p76
    %p78 = scmp.ne.s32.totalorder %s67, %s70
    %p79 = scmp.eq.s32.totalorder %s13, 5
    %p80 = por %p78, %p79
    %p81 = scmp.ne.s32.totalorder %s70, %s71
    %p82 = scmp.eq.s32.totalorder %s13, 0
    %p83 = por %p81, %p82
    %p84 = scmp.ne.s32.totalorder %s70, %s71
    %p85 = scmp.eq.s32.totalorder %s14, 5
    %p86 = por %p84, %p85
    %p88 = scmp.ne.s32.totalorder %s71, %s87
    %p89 = scmp.eq.s32.totalorder %s14, 0
    %p90 = por %p88, %p89
    %s91 = ssub.s32 %s15, %s34
    %s92 = ssub.s32 %s16, %s30
    %s93 = sor.u32 %s91, %s92
    %p94 = scmp.eq.s32.totalorder %s93, 0
    %s96 = sadd.s32 %s95, 1
    %s97 = scalar_select %p94, %s95, %s96
    %p100 = pneg %p94
    %p101 = scmp.eq.s32.totalorder %s8, 5
    %p102 = por %p100, %p101
    %p103 = scmp.ne.s32.totalorder %s95, %s98
    %p104 = scmp.eq.s32.totalorder %s8, 0
    %p105 = por %p103, %p104
    %p106 = scmp.ne.s32.totalorder %s95, %s98
    %p107 = scmp.eq.s32.totalorder %s13, 5
    %p108 = por %p106, %p107
    %p109 = scmp.ne.s32.totalorder %s98, %s99
    %p110 = scmp.eq.s32.totalorder %s13, 0
    %p111 = por %p109, %p110
    %p112 = scmp.ne.s32.totalorder %s98, %s99
    %p113 = scmp.eq.s32.totalorder %s14, 5
    %p114 = por %p112, %p113
    %p116 = scmp.ne.s32.totalorder %s99, %s115
    %p117 = scmp.eq.s32.totalorder %s14, 0
    %p118 = por %p116, %p117
    %p119 = scmp.le.s32.totalorder 1, %s8
    %p120 = scmp.lt.s32.totalorder %s8, 7
    %p121 = pnand %p119, %p120
    %p122 = pneg %p121
    // Predicated region
    $region9: #{dht_forward.1} parent=5 // pred_check
      _
    $region10: #{dht_forward.1} parent=5 // pred_check_branch
      %124 = sbr.rel (%p121) target = $region12
    $region11: #{dht_forward.1} parent=5 // pred_region
      %s125 = ssub.s32 %s8, 1
      // Predicated region
      $region13: #{dht_forward.1} parent=11 // pred_check
        %p126 = pneg %p83
      $region14: #{dht_forward.1} parent=11 // pred_check_branch
        %128 = sbr.rel (%p126) target = $region16
      $region15: #{dht_forward.1} parent=11 // pred_region
        %s129 = smul.u32 2, %s20
        %p130 = scmp.lt.s32.totalorder %s18, 0
        %s131 = scalar_select %p130, %s18, 0
        %p132 = scmp.lt.s32.totalorder %s129, 1
        %s133 = scalar_select %p132, %s129, 1
        %s134 = smul.addr %s131, 2
        %s135 = sadd.s32 %s133, %s134
        %s136 = smul.addr %s135, 8
        %s137 = scalar_lea.vmem %s1, %s136
        %s138 = smul.u32 2, %s20
      $region16: #{dht_forward.1} parent=11 // pred_fallthru
        _
    $region12: #{dht_forward.1} parent=5 // pred_fallthru
      _
    %p139 = scmp.lt.s32.totalorder %s8, 6
    // Predicated region
    $region17: #{dht_forward.1} parent=5 // pred_check
      %p140 = pneg %p139
    $region18: #{dht_forward.1} parent=5 // pred_check_branch
      %142 = sbr.rel (%p140) target = $region20
    $region19: #{dht_forward.1} parent=5 // pred_region
      // Predicated region
      $region21: #{dht_forward.1} parent=19 // pred_check
        %p143 = pneg %p49
      $region22: #{dht_forward.1} parent=19 // pred_check_branch
        %145 = sbr.rel (%p143) target = $region24
      $region23: #{dht_forward.1} parent=19 // pred_region
        %s146 = smul.u32 4, %s16
        %s147 = smul.u32 2, %s17
        %p148 = scmp.lt.s32.totalorder %s146, 23
        %s149 = scalar_select %p148, %s146, 23
        %p150 = scmp.lt.s32.totalorder %s147, 1
        %s151 = scalar_select %p150, %s147, 1
        %s152 = smul.addr %s149, 2
        %s153 = sadd.s32 %s151, %s152
        %s154 = smul.addr %s153, 8
        %s155 = scalar_lea.vmem %s0, %s154
        %s156 = smul.u32 4, %s16
        %s157 = smul.u32 2, %s17
      $region24: #{dht_forward.1} parent=19 // pred_fallthru
        _
    $region20: #{dht_forward.1} parent=5 // pred_fallthru
      _
    %p158 = scmp.le.s32.totalorder 1, %s8
    %p159 = scmp.lt.s32.totalorder %s8, 7
    %p160 = pnand %p158, %p159
    %p161 = pneg %p160
    // Predicated region
    $region25: #{dht_forward.1} parent=5 // pred_check
      _
    $region26: #{dht_forward.1} parent=5 // pred_check_branch
      %163 = sbr.rel (%p160) target = $region28
    $region27: #{dht_forward.1} parent=5 // pred_region
      %s164 = ssub.s32 %s8, 1
      %s165 = smul.u32 4, %s19
      %s166 = smul.u32 2, %s20
      %p167 = scmp.lt.s32.totalorder %s165, 23
      %s168 = scalar_select %p167, %s165, 23
      %p169 = scmp.lt.s32.totalorder %s166, 1
      %s170 = scalar_select %p169, %s166, 1
      %s171 = smul.addr %s168, 2
      %s172 = sadd.s32 %s170, %s171
      %s173 = smul.addr %s172, 8
      %s174 = scalar_lea.vmem %s0, %s173
      %p175 = pneg %p55
      %p176 = pneg %p52
      %s177 = smul.u32 2, %s20
      %p178 = scmp.lt.s32.totalorder %s18, 0
      %s179 = scalar_select %p178, %s18, 0
      %p180 = scmp.lt.s32.totalorder %s177, 1
      %s181 = scalar_select %p180, %s177, 1
      %s182 = smul.addr %s179, 2
      %s183 = sadd.s32 %s181, %s182
      %s184 = smul.addr %s183, 8
      %s185 = scalar_lea.vmem %s1, %s184
      %p186 = pneg %p83
      %p187 = pneg %p80
      %p188 = pneg %p111
      %p189 = pneg %p108
      %s190 = smul.u32 12, %s19
      %p191 = scmp.lt.s32.totalorder %s18, 0
      %s192 = scalar_select %p191, %s18, 0
      %p193 = scmp.lt.s32.totalorder %s190, 71
      %s194 = scalar_select %p193, %s190, 71
      %s195 = smul.addr %s192, 72
      %s196 = sadd.s32 %s194, %s195
      %s197 = smul.addr %s196, 8
      %s198 = scalar_lea.vmem %s2, %s197
      %s199 = smul.u32 4, %s19
      %s200 = smul.u32 2, %s20
      %p201 = scmp.lt.s32.totalorder %s199, 23
      %s202 = scalar_select %p201, %s199, 23
      %p203 = scmp.lt.s32.totalorder %s200, 1
      %s204 = scalar_select %p203, %s200, 1
      %s205 = smul.addr %s202, 2
      %s206 = sadd.s32 %s204, %s205
      %s207 = smul.addr %s206, 8
      %s208 = scalar_lea.vmem %s0, %s207
      %s209 = smul.u32 4, %s19
      %s210 = smul.u32 2, %s20
      %s211 = smul.u32 2, %s20
      %p212 = scmp.lt.s32.totalorder %s18, 0
      %s213 = scalar_select %p212, %s18, 0
      %p214 = scmp.lt.s32.totalorder %s211, 1
      %s215 = scalar_select %p214, %s211, 1
      %s216 = smul.addr %s213, 2
      %s217 = sadd.s32 %s215, %s216
      %s218 = smul.addr %s217, 8
      %s219 = scalar_lea.vmem %s1, %s218
      %s220 = smul.u32 2, %s20
      %s221 = smul.u32 12, %s19
      %p222 = scmp.lt.s32.totalorder %s18, 0
      %s223 = scalar_select %p222, %s18, 0
      %p224 = scmp.lt.s32.totalorder %s221, 71
      %s225 = scalar_select %p224, %s221, 71
      %s226 = smul.addr %s223, 72
      %s227 = sadd.s32 %s225, %s226
      %s228 = smul.addr %s227, 8
      %s229 = scalar_lea.vmem %s2, %s228
      %s230 = smul.u32 12, %s19
      %p231 = scmp.eq.s32.totalorder %s20, 0
      // Predicated region
      $region29: #{dht_forward.1} parent=27 // pred_check
        %p232 = pneg %p231
      $region30: #{dht_forward.1} parent=27 // pred_check_branch
        %234 = sbr.rel (%p232) target = $region32
      $region31: #{dht_forward.1} parent=27 // pred_region
        %235 = vst [vmem:[%s229] sm:$0xff] 0.0
        %236 = vst [vmem:[%s229 + $0x8] sm:$0xff] 0.0
        %237 = vst [vmem:[%s229 + $0x10] sm:$0xff] 0.0
        %238 = vst [vmem:[%s229 + $0x18] sm:$0xff] 0.0
        %239 = vst [vmem:[%s229 + $0x20] sm:$0xff] 0.0
        %240 = vst [vmem:[%s229 + $0x28] sm:$0xff] 0.0
        %241 = vst [vmem:[%s229 + $0x30] sm:$0xff] 0.0
        %242 = vst [vmem:[%s229 + $0x38] sm:$0xff] 0.0
        %243 = vst [vmem:[%s229 + $0x40] sm:$0xff] 0.0
        %244 = vst [vmem:[%s229 + $0x48] sm:$0xff] 0.0
        %245 = vst [vmem:[%s229 + $0x50] sm:$0xff] 0.0
        %246 = vst [vmem:[%s229 + $0x58] sm:$0xff] 0.0
      $region32: #{dht_forward.1} parent=27 // pred_fallthru
        _
      %v247 = vld [vmem:[%s208] sm:$0xff]
      %v248 = vld [vmem:[%s208 + $0x8] sm:$0xff]
      %v249 = vld [vmem:[%s208 + $0x10] sm:$0xff]
      %v250 = vld [vmem:[%s208 + $0x18] sm:$0xff]
      %v251 = vld [vmem:[%s208 + $0x20] sm:$0xff]
      %v252 = vld [vmem:[%s208 + $0x28] sm:$0xff]
      %v253 = vld [vmem:[%s208 + $0x30] sm:$0xff]
      %v254 = vld [vmem:[%s208 + $0x38] sm:$0xff]
      %v255 = vlaneseq
      %v256 = vshrl.u32 %v255, 7
      %v257 = vadd.s32 %v256, 8
      %v258 = vadd.s32 %v256, 16
      %v259 = vadd.s32 %v256, 24
      %v260 = vadd.s32 %v256, 32
      %v261 = vadd.s32 %v256, 40
      %v262 = vrot.slane %v248, 7
      %v263 = vrot.slane %v250, 7
      %v264 = vrot.slane %v252, 7
      %v265 = vrot.slane %v254, 7
      %vm266 = vcmask 1040384
      %v267 = vsel %vm266, %v247, %v262
      %vm268 = vcmask 1041409
      %v269 = vsel %vm268, %v247, %v262
      %v270 = vrot.slane %v269, 1
      %vm271 = vcmask 1042434
      %v272 = vsel %vm271, %v247, %v262
      %v273 = vrot.slane %v272, 2
      %vm274 = vcmask 1043459
      %v275 = vsel %vm274, %v247, %v262
      %v276 = vrot.slane %v275, 3
      %vm277 = vcmask 1044484
      %v278 = vsel %vm277, %v247, %v262
      %v279 = vrot.slane %v278, 4
      %vm280 = vcmask 1045509
      %v281 = vsel %vm280, %v247, %v262
      %v282 = vrot.slane %v281, 5
      %vm283 = vcmask 1046534
      %v284 = vsel %vm283, %v247, %v262
      %v285 = vrot.slane %v284, 6
      %vm286 = vcmask 1046528
      %v287 = vsel %vm286, %v262, %v247
      %v288 = vrot.slane %v287, 7
      %v289 = vsel %vm266, %v249, %v263
      %v290 = vsel %vm268, %v249, %v263
      %v291 = vrot.slane %v290, 1
      %v292 = vsel %vm271, %v249, %v263
      %v293 = vrot.slane %v292, 2
      %v294 = vsel %vm274, %v249, %v263
      %v295 = vrot.slane %v294, 3
      %v296 = vsel %vm277, %v249, %v263
      %v297 = vrot.slane %v296, 4
      %v298 = vsel %vm280, %v249, %v263
      %v299 = vrot.slane %v298, 5
      %v300 = vsel %vm283, %v249, %v263
      %v301 = vrot.slane %v300, 6
      %v302 = vsel %vm286, %v263, %v249
      %v303 = vrot.slane %v302, 7
      %v304 = vsel %vm266, %v251, %v264
      %v305 = vsel %vm268, %v251, %v264
      %v306 = vrot.slane %v305, 1
      %v307 = vsel %vm271, %v251, %v264
      %v308 = vrot.slane %v307, 2
      %v309 = vsel %vm274, %v251, %v264
      %v310 = vrot.slane %v309, 3
      %v311 = vsel %vm277, %v251, %v264
      %v312 = vrot.slane %v311, 4
      %v313 = vsel %vm280, %v251, %v264
      %v314 = vrot.slane %v313, 5
      %v315 = vsel %vm283, %v251, %v264
      %v316 = vrot.slane %v315, 6
      %v317 = vsel %vm286, %v264, %v251
      %v318 = vrot.slane %v317, 7
      %v319 = vsel %vm266, %v253, %v265
      %v320 = vsel %vm268, %v253, %v265
      %v321 = vrot.slane %v320, 1
      %v322 = vsel %vm271, %v253, %v265
      %v323 = vrot.slane %v322, 2
      %v324 = vsel %vm274, %v253, %v265
      %v325 = vrot.slane %v324, 3
      %v326 = vsel %vm277, %v253, %v265
      %v327 = vrot.slane %v326, 4
      %v328 = vsel %vm280, %v253, %v265
      %v329 = vrot.slane %v328, 5
      %v330 = vsel %vm283, %v253, %v265
      %v331 = vrot.slane %v330, 6
      %v332 = vsel %vm286, %v265, %v253
      %v333 = vrot.slane %v332, 7
      %v334 = vperm.slane %v267, 0
      %v335 = vperm.slane %v267, 1
      %v336 = vperm.slane %v270, 0
      %v337 = vperm.slane %v270, 1
      %v338 = vperm.slane %v273, 0
      %v339 = vperm.slane %v273, 1
      %v340 = vperm.slane %v276, 0
      %v341 = vperm.slane %v276, 1
      %v342 = vperm.slane %v279, 0
      %v343 = vperm.slane %v279, 1
      %v344 = vperm.slane %v282, 0
      %v345 = vperm.slane %v282, 1
      %v346 = vperm.slane %v285, 0
      %v347 = vperm.slane %v285, 1
      %v348 = vperm.slane %v288, 0
      %v349 = vperm.slane %v288, 1
      %v350 = vperm.slane %v289, 0
      %v351 = vperm.slane %v289, 1
      %v352 = vperm.slane %v291, 0
      %v353 = vperm.slane %v291, 1
      %v354 = vperm.slane %v293, 0
      %v355 = vperm.slane %v293, 1
      %v356 = vperm.slane %v295, 0
      %v357 = vperm.slane %v295, 1
      %v358 = vperm.slane %v297, 0
      %v359 = vperm.slane %v297, 1
      %v360 = vperm.slane %v299, 0
      %v361 = vperm.slane %v299, 1
      %v362 = vperm.slane %v301, 0
      %v363 = vperm.slane %v301, 1
      %v364 = vperm.slane %v303, 0
      %v365 = vperm.slane %v303, 1
      %v366 = vperm.slane %v304, 0
      %v367 = vperm.slane %v304, 1
      %v368 = vperm.slane %v306, 0
      %v369 = vperm.slane %v306, 1
      %v370 = vperm.slane %v308, 0
      %v371 = vperm.slane %v308, 1
      %v372 = vperm.slane %v310, 0
      %v373 = vperm.slane %v310, 1
      %v374 = vperm.slane %v312, 0
      %v375 = vperm.slane %v312, 1
      %v376 = vperm.slane %v314, 0
      %v377 = vperm.slane %v314, 1
      %v378 = vperm.slane %v316, 0
      %v379 = vperm.slane %v316, 1
      %v380 = vperm.slane %v318, 0
      %v381 = vperm.slane %v318, 1
      %v382 = vperm.slane %v319, 0
      %v383 = vperm.slane %v319, 1
      %v384 = vperm.slane %v321, 0
      %v385 = vperm.slane %v321, 1
      %v386 = vperm.slane %v323, 0
      %v387 = vperm.slane %v323, 1
      %v388 = vperm.slane %v325, 0
      %v389 = vperm.slane %v325, 1
      %v390 = vperm.slane %v327, 0
      %v391 = vperm.slane %v327, 1
      %v392 = vperm.slane %v329, 0
      %v393 = vperm.slane %v329, 1
      %v394 = vperm.slane %v331, 0
      %v395 = vperm.slane %v331, 1
      %v396 = vperm.slane %v333, 0
      %v397 = vperm.slane %v333, 1
      %vm398 = vcmp.eq.s32.totalorder %v334, %v256
      %vm399 = vcmp.eq.s32.totalorder %v335, %v256
      %vm400 = vcmp.eq.s32.totalorder %v334, %v257
      %vm401 = vcmp.eq.s32.totalorder %v335, %v257
      %vm402 = vcmp.eq.s32.totalorder %v334, %v258
      %vm403 = vcmp.eq.s32.totalorder %v335, %v258
      %vm404 = vcmp.eq.s32.totalorder %v334, %v259
      %vm405 = vcmp.eq.s32.totalorder %v335, %v259
      %vm406 = vcmp.eq.s32.totalorder %v334, %v260
      %vm407 = vcmp.eq.s32.totalorder %v335, %v260
      %vm408 = vcmp.eq.s32.totalorder %v334, %v261
      %vm409 = vcmp.eq.s32.totalorder %v335, %v261
      %vm410 = vcmp.eq.s32.totalorder %v336, %v256
      %vm411 = vcmp.eq.s32.totalorder %v337, %v256
      %vm412 = vcmp.eq.s32.totalorder %v336, %v257
      %vm413 = vcmp.eq.s32.totalorder %v337, %v257
      %vm414 = vcmp.eq.s32.totalorder %v336, %v258
      %vm415 = vcmp.eq.s32.totalorder %v337, %v258
      %vm416 = vcmp.eq.s32.totalorder %v336, %v259
      %vm417 = vcmp.eq.s32.totalorder %v337, %v259
      %vm418 = vcmp.eq.s32.totalorder %v336, %v260
      %vm419 = vcmp.eq.s32.totalorder %v337, %v260
      %vm420 = vcmp.eq.s32.totalorder %v336, %v261
      %vm421 = vcmp.eq.s32.totalorder %v337, %v261
      %vm422 = vcmp.eq.s32.totalorder %v338, %v256
      %vm423 = vcmp.eq.s32.totalorder %v339, %v256
      %vm424 = vcmp.eq.s32.totalorder %v338, %v257
      %vm425 = vcmp.eq.s32.totalorder %v339, %v257
      %vm426 = vcmp.eq.s32.totalorder %v338, %v258
      %vm427 = vcmp.eq.s32.totalorder %v339, %v258
      %vm428 = vcmp.eq.s32.totalorder %v338, %v259
      %vm429 = vcmp.eq.s32.totalorder %v339, %v259
      %vm430 = vcmp.eq.s32.totalorder %v338, %v260
      %vm431 = vcmp.eq.s32.totalorder %v339, %v260
      %vm432 = vcmp.eq.s32.totalorder %v338, %v261
      %vm433 = vcmp.eq.s32.totalorder %v339, %v261
      %vm434 = vcmp.eq.s32.totalorder %v340, %v256
      %vm435 = vcmp.eq.s32.totalorder %v341, %v256
      %vm436 = vcmp.eq.s32.totalorder %v340, %v257
      %vm437 = vcmp.eq.s32.totalorder %v341, %v257
      %vm438 = vcmp.eq.s32.totalorder %v340, %v258
      %vm439 = vcmp.eq.s32.totalorder %v341, %v258
      %vm440 = vcmp.eq.s32.totalorder %v340, %v259
      %vm441 = vcmp.eq.s32.totalorder %v341, %v259
      %vm442 = vcmp.eq.s32.totalorder %v340, %v260
      %vm443 = vcmp.eq.s32.totalorder %v341, %v260
      %vm444 = vcmp.eq.s32.totalorder %v340, %v261
      %vm445 = vcmp.eq.s32.totalorder %v341, %v261
      %vm446 = vcmp.eq.s32.totalorder %v342, %v256
      %vm447 = vcmp.eq.s32.totalorder %v343, %v256
      %vm448 = vcmp.eq.s32.totalorder %v342, %v257
      %vm449 = vcmp.eq.s32.totalorder %v343, %v257
      %vm450 = vcmp.eq.s32.totalorder %v342, %v258
      %vm451 = vcmp.eq.s32.totalorder %v343, %v258
      %vm452 = vcmp.eq.s32.totalorder %v342, %v259
      %vm453 = vcmp.eq.s32.totalorder %v343, %v259
      %vm454 = vcmp.eq.s32.totalorder %v342, %v260
      %vm455 = vcmp.eq.s32.totalorder %v343, %v260
      %vm456 = vcmp.eq.s32.totalorder %v342, %v261
      %vm457 = vcmp.eq.s32.totalorder %v343, %v261
      %vm458 = vcmp.eq.s32.totalorder %v344, %v256
      %vm459 = vcmp.eq.s32.totalorder %v345, %v256
      %vm460 = vcmp.eq.s32.totalorder %v344, %v257
      %vm461 = vcmp.eq.s32.totalorder %v345, %v257
      %vm462 = vcmp.eq.s32.totalorder %v344, %v258
      %vm463 = vcmp.eq.s32.totalorder %v345, %v258
      %vm464 = vcmp.eq.s32.totalorder %v344, %v259
      %vm465 = vcmp.eq.s32.totalorder %v345, %v259
      %vm466 = vcmp.eq.s32.totalorder %v344, %v260
      %vm467 = vcmp.eq.s32.totalorder %v345, %v260
      %vm468 = vcmp.eq.s32.totalorder %v344, %v261
      %vm469 = vcmp.eq.s32.totalorder %v345, %v261
      %vm470 = vcmp.eq.s32.totalorder %v346, %v256
      %vm471 = vcmp.eq.s32.totalorder %v347, %v256
      %vm472 = vcmp.eq.s32.totalorder %v346, %v257
      %vm473 = vcmp.eq.s32.totalorder %v347, %v257
      %vm474 = vcmp.eq.s32.totalorder %v346, %v258
      %vm475 = vcmp.eq.s32.totalorder %v347, %v258
      %vm476 = vcmp.eq.s32.totalorder %v346, %v259
      %vm477 = vcmp.eq.s32.totalorder %v347, %v259
      %vm478 = vcmp.eq.s32.totalorder %v346, %v260
      %vm479 = vcmp.eq.s32.totalorder %v347, %v260
      %vm480 = vcmp.eq.s32.totalorder %v346, %v261
      %vm481 = vcmp.eq.s32.totalorder %v347, %v261
      %vm482 = vcmp.eq.s32.totalorder %v348, %v256
      %vm483 = vcmp.eq.s32.totalorder %v349, %v256
      %vm484 = vcmp.eq.s32.totalorder %v348, %v257
      %vm485 = vcmp.eq.s32.totalorder %v349, %v257
      %vm486 = vcmp.eq.s32.totalorder %v348, %v258
      %vm487 = vcmp.eq.s32.totalorder %v349, %v258
      %vm488 = vcmp.eq.s32.totalorder %v348, %v259
      %vm489 = vcmp.eq.s32.totalorder %v349, %v259
      %vm490 = vcmp.eq.s32.totalorder %v348, %v260
      %vm491 = vcmp.eq.s32.totalorder %v349, %v260
      %vm492 = vcmp.eq.s32.totalorder %v348, %v261
      %vm493 = vcmp.eq.s32.totalorder %v349, %v261
      %vm494 = vcmp.eq.s32.totalorder %v350, %v256
      %vm495 = vcmp.eq.s32.totalorder %v351, %v256
      %vm496 = vcmp.eq.s32.totalorder %v350, %v257
      %vm497 = vcmp.eq.s32.totalorder %v351, %v257
      %vm498 = vcmp.eq.s32.totalorder %v350, %v258
      %vm499 = vcmp.eq.s32.totalorder %v351, %v258
      %vm500 = vcmp.eq.s32.totalorder %v350, %v259
      %vm501 = vcmp.eq.s32.totalorder %v351, %v259
      %vm502 = vcmp.eq.s32.totalorder %v350, %v260
      %vm503 = vcmp.eq.s32.totalorder %v351, %v260
      %vm504 = vcmp.eq.s32.totalorder %v350, %v261
      %vm505 = vcmp.eq.s32.totalorder %v351, %v261
      %vm506 = vcmp.eq.s32.totalorder %v352, %v256
      %vm507 = vcmp.eq.s32.totalorder %v353, %v256
      %vm508 = vcmp.eq.s32.totalorder %v352, %v257
      %vm509 = vcmp.eq.s32.totalorder %v353, %v257
      %vm510 = vcmp.eq.s32.totalorder %v352, %v258
      %vm511 = vcmp.eq.s32.totalorder %v353, %v258
      %vm512 = vcmp.eq.s32.totalorder %v352, %v259
      %vm513 = vcmp.eq.s32.totalorder %v353, %v259
      %vm514 = vcmp.eq.s32.totalorder %v352, %v260
      %vm515 = vcmp.eq.s32.totalorder %v353, %v260
      %vm516 = vcmp.eq.s32.totalorder %v352, %v261
      %vm517 = vcmp.eq.s32.totalorder %v353, %v261
      %vm518 = vcmp.eq.s32.totalorder %v354, %v256
      %vm519 = vcmp.eq.s32.totalorder %v355, %v256
      %vm520 = vcmp.eq.s32.totalorder %v354, %v257
      %vm521 = vcmp.eq.s32.totalorder %v355, %v257
      %vm522 = vcmp.eq.s32.totalorder %v354, %v258
      %vm523 = vcmp.eq.s32.totalorder %v355, %v258
      %vm524 = vcmp.eq.s32.totalorder %v354, %v259
      %vm525 = vcmp.eq.s32.totalorder %v355, %v259
      %vm526 = vcmp.eq.s32.totalorder %v354, %v260
      %vm527 = vcmp.eq.s32.totalorder %v355, %v260
      %vm528 = vcmp.eq.s32.totalorder %v354, %v261
      %vm529 = vcmp.eq.s32.totalorder %v355, %v261
      %vm530 = vcmp.eq.s32.totalorder %v356, %v256
      %vm531 = vcmp.eq.s32.totalorder %v357, %v256
      %vm532 = vcmp.eq.s32.totalorder %v356, %v257
      %vm533 = vcmp.eq.s32.totalorder %v357, %v257
      %vm534 = vcmp.eq.s32.totalorder %v356, %v258
      %vm535 = vcmp.eq.s32.totalorder %v357, %v258
      %vm536 = vcmp.eq.s32.totalorder %v356, %v259
      %vm537 = vcmp.eq.s32.totalorder %v357, %v259
      %vm538 = vcmp.eq.s32.totalorder %v356, %v260
      %vm539 = vcmp.eq.s32.totalorder %v357, %v260
      %vm540 = vcmp.eq.s32.totalorder %v356, %v261
      %vm541 = vcmp.eq.s32.totalorder %v357, %v261
      %vm542 = vcmp.eq.s32.totalorder %v358, %v256
      %vm543 = vcmp.eq.s32.totalorder %v359, %v256
      %vm544 = vcmp.eq.s32.totalorder %v358, %v257
      %vm545 = vcmp.eq.s32.totalorder %v359, %v257
      %vm546 = vcmp.eq.s32.totalorder %v358, %v258
      %vm547 = vcmp.eq.s32.totalorder %v359, %v258
      %vm548 = vcmp.eq.s32.totalorder %v358, %v259
      %vm549 = vcmp.eq.s32.totalorder %v359, %v259
      %vm550 = vcmp.eq.s32.totalorder %v358, %v260
      %vm551 = vcmp.eq.s32.totalorder %v359, %v260
      %vm552 = vcmp.eq.s32.totalorder %v358, %v261
      %vm553 = vcmp.eq.s32.totalorder %v359, %v261
      %vm554 = vcmp.eq.s32.totalorder %v360, %v256
      %vm555 = vcmp.eq.s32.totalorder %v361, %v256
      %vm556 = vcmp.eq.s32.totalorder %v360, %v257
      %vm557 = vcmp.eq.s32.totalorder %v361, %v257
      %vm558 = vcmp.eq.s32.totalorder %v360, %v258
      %vm559 = vcmp.eq.s32.totalorder %v361, %v258
      %vm560 = vcmp.eq.s32.totalorder %v360, %v259
      %vm561 = vcmp.eq.s32.totalorder %v361, %v259
      %vm562 = vcmp.eq.s32.totalorder %v360, %v260
      %vm563 = vcmp.eq.s32.totalorder %v361, %v260
      %vm564 = vcmp.eq.s32.totalorder %v360, %v261
      %vm565 = vcmp.eq.s32.totalorder %v361, %v261
      %vm566 = vcmp.eq.s32.totalorder %v362, %v256
      %vm567 = vcmp.eq.s32.totalorder %v363, %v256
      %vm568 = vcmp.eq.s32.totalorder %v362, %v257
      %vm569 = vcmp.eq.s32.totalorder %v363, %v257
      %vm570 = vcmp.eq.s32.totalorder %v362, %v258
      %vm571 = vcmp.eq.s32.totalorder %v363, %v258
      %vm572 = vcmp.eq.s32.totalorder %v362, %v259
      %vm573 = vcmp.eq.s32.totalorder %v363, %v259
      %vm574 = vcmp.eq.s32.totalorder %v362, %v260
      %vm575 = vcmp.eq.s32.totalorder %v363, %v260
      %vm576 = vcmp.eq.s32.totalorder %v362, %v261
      %vm577 = vcmp.eq.s32.totalorder %v363, %v261
      %vm578 = vcmp.eq.s32.totalorder %v364, %v256
      %vm579 = vcmp.eq.s32.totalorder %v365, %v256
      %vm580 = vcmp.eq.s32.totalorder %v364, %v257
      %vm581 = vcmp.eq.s32.totalorder %v365, %v257
      %vm582 = vcmp.eq.s32.totalorder %v364, %v258
      %vm583 = vcmp.eq.s32.totalorder %v365, %v258
      %vm584 = vcmp.eq.s32.totalorder %v364, %v259
      %vm585 = vcmp.eq.s32.totalorder %v365, %v259
      %vm586 = vcmp.eq.s32.totalorder %v364, %v260
      %vm587 = vcmp.eq.s32.totalorder %v365, %v260
      %vm588 = vcmp.eq.s32.totalorder %v364, %v261
      %vm589 = vcmp.eq.s32.totalorder %v365, %v261
      %vm590 = vcmp.eq.s32.totalorder %v366, %v256
      %vm591 = vcmp.eq.s32.totalorder %v367, %v256
      %vm592 = vcmp.eq.s32.totalorder %v366, %v257
      %vm593 = vcmp.eq.s32.totalorder %v367, %v257
      %vm594 = vcmp.eq.s32.totalorder %v366, %v258
      %vm595 = vcmp.eq.s32.totalorder %v367, %v258
      %vm596 = vcmp.eq.s32.totalorder %v366, %v259
      %vm597 = vcmp.eq.s32.totalorder %v367, %v259
      %vm598 = vcmp.eq.s32.totalorder %v366, %v260
      %vm599 = vcmp.eq.s32.totalorder %v367, %v260
      %vm600 = vcmp.eq.s32.totalorder %v366, %v261
      %vm601 = vcmp.eq.s32.totalorder %v367, %v261
      %vm602 = vcmp.eq.s32.totalorder %v368, %v256
      %vm603 = vcmp.eq.s32.totalorder %v369, %v256
      %vm604 = vcmp.eq.s32.totalorder %v368, %v257
      %vm605 = vcmp.eq.s32.totalorder %v369, %v257
      %vm606 = vcmp.eq.s32.totalorder %v368, %v258
      %vm607 = vcmp.eq.s32.totalorder %v369, %v258
      %vm608 = vcmp.eq.s32.totalorder %v368, %v259
      %vm609 = vcmp.eq.s32.totalorder %v369, %v259
      %vm610 = vcmp.eq.s32.totalorder %v368, %v260
      %vm611 = vcmp.eq.s32.totalorder %v369, %v260
      %vm612 = vcmp.eq.s32.totalorder %v368, %v261
      %vm613 = vcmp.eq.s32.totalorder %v369, %v261
      %vm614 = vcmp.eq.s32.totalorder %v370, %v256
      %vm615 = vcmp.eq.s32.totalorder %v371, %v256
      %vm616 = vcmp.eq.s32.totalorder %v370, %v257
      %vm617 = vcmp.eq.s32.totalorder %v371, %v257
      %vm618 = vcmp.eq.s32.totalorder %v370, %v258
      %vm619 = vcmp.eq.s32.totalorder %v371, %v258
      %vm620 = vcmp.eq.s32.totalorder %v370, %v259
      %vm621 = vcmp.eq.s32.totalorder %v371, %v259
      %vm622 = vcmp.eq.s32.totalorder %v370, %v260
      %vm623 = vcmp.eq.s32.totalorder %v371, %v260
      %vm624 = vcmp.eq.s32.totalorder %v370, %v261
      %vm625 = vcmp.eq.s32.totalorder %v371, %v261
      %vm626 = vcmp.eq.s32.totalorder %v372, %v256
      %vm627 = vcmp.eq.s32.totalorder %v373, %v256
      %vm628 = vcmp.eq.s32.totalorder %v372, %v257
      %vm629 = vcmp.eq.s32.totalorder %v373, %v257
      %vm630 = vcmp.eq.s32.totalorder %v372, %v258
      %vm631 = vcmp.eq.s32.totalorder %v373, %v258
      %vm632 = vcmp.eq.s32.totalorder %v372, %v259
      %vm633 = vcmp.eq.s32.totalorder %v373, %v259
      %vm634 = vcmp.eq.s32.totalorder %v372, %v260
      %vm635 = vcmp.eq.s32.totalorder %v373, %v260
      %vm636 = vcmp.eq.s32.totalorder %v372, %v261
      %vm637 = vcmp.eq.s32.totalorder %v373, %v261
      %vm638 = vcmp.eq.s32.totalorder %v374, %v256
      %vm639 = vcmp.eq.s32.totalorder %v375, %v256
      %vm640 = vcmp.eq.s32.totalorder %v374, %v257
      %vm641 = vcmp.eq.s32.totalorder %v375, %v257
      %vm642 = vcmp.eq.s32.totalorder %v374, %v258
      %vm643 = vcmp.eq.s32.totalorder %v375, %v258
      %vm644 = vcmp.eq.s32.totalorder %v374, %v259
      %vm645 = vcmp.eq.s32.totalorder %v375, %v259
      %vm646 = vcmp.eq.s32.totalorder %v374, %v260
      %vm647 = vcmp.eq.s32.totalorder %v375, %v260
      %vm648 = vcmp.eq.s32.totalorder %v374, %v261
      %vm649 = vcmp.eq.s32.totalorder %v375, %v261
      %vm650 = vcmp.eq.s32.totalorder %v376, %v256
      %vm651 = vcmp.eq.s32.totalorder %v377, %v256
      %vm652 = vcmp.eq.s32.totalorder %v376, %v257
      %vm653 = vcmp.eq.s32.totalorder %v377, %v257
      %vm654 = vcmp.eq.s32.totalorder %v376, %v258
      %vm655 = vcmp.eq.s32.totalorder %v377, %v258
      %vm656 = vcmp.eq.s32.totalorder %v376, %v259
      %vm657 = vcmp.eq.s32.totalorder %v377, %v259
      %vm658 = vcmp.eq.s32.totalorder %v376, %v260
      %vm659 = vcmp.eq.s32.totalorder %v377, %v260
      %vm660 = vcmp.eq.s32.totalorder %v376, %v261
      %vm661 = vcmp.eq.s32.totalorder %v377, %v261
      %vm662 = vcmp.eq.s32.totalorder %v378, %v256
      %vm663 = vcmp.eq.s32.totalorder %v379, %v256
      %vm664 = vcmp.eq.s32.totalorder %v378, %v257
      %vm665 = vcmp.eq.s32.totalorder %v379, %v257
      %vm666 = vcmp.eq.s32.totalorder %v378, %v258
      %vm667 = vcmp.eq.s32.totalorder %v379, %v258
      %vm668 = vcmp.eq.s32.totalorder %v378, %v259
      %vm669 = vcmp.eq.s32.totalorder %v379, %v259
      %vm670 = vcmp.eq.s32.totalorder %v378, %v260
      %vm671 = vcmp.eq.s32.totalorder %v379, %v260
      %vm672 = vcmp.eq.s32.totalorder %v378, %v261
      %vm673 = vcmp.eq.s32.totalorder %v379, %v261
      %vm674 = vcmp.eq.s32.totalorder %v380, %v256
      %vm675 = vcmp.eq.s32.totalorder %v381, %v256
      %vm676 = vcmp.eq.s32.totalorder %v380, %v257
      %vm677 = vcmp.eq.s32.totalorder %v381, %v257
      %vm678 = vcmp.eq.s32.totalorder %v380, %v258
      %vm679 = vcmp.eq.s32.totalorder %v381, %v258
      %vm680 = vcmp.eq.s32.totalorder %v380, %v259
      %vm681 = vcmp.eq.s32.totalorder %v381, %v259
      %vm682 = vcmp.eq.s32.totalorder %v380, %v260
      %vm683 = vcmp.eq.s32.totalorder %v381, %v260
      %vm684 = vcmp.eq.s32.totalorder %v380, %v261
      %vm685 = vcmp.eq.s32.totalorder %v381, %v261
      %vm686 = vcmp.eq.s32.totalorder %v382, %v256
      %vm687 = vcmp.eq.s32.totalorder %v383, %v256
      %vm688 = vcmp.eq.s32.totalorder %v382, %v257
      %vm689 = vcmp.eq.s32.totalorder %v383, %v257
      %vm690 = vcmp.eq.s32.totalorder %v382, %v258
      %vm691 = vcmp.eq.s32.totalorder %v383, %v258
      %vm692 = vcmp.eq.s32.totalorder %v382, %v259
      %vm693 = vcmp.eq.s32.totalorder %v383, %v259
      %vm694 = vcmp.eq.s32.totalorder %v382, %v260
      %vm695 = vcmp.eq.s32.totalorder %v383, %v260
      %vm696 = vcmp.eq.s32.totalorder %v382, %v261
      %vm697 = vcmp.eq.s32.totalorder %v383, %v261
      %vm698 = vcmp.eq.s32.totalorder %v384, %v256
      %vm699 = vcmp.eq.s32.totalorder %v385, %v256
      %vm700 = vcmp.eq.s32.totalorder %v384, %v257
      %vm701 = vcmp.eq.s32.totalorder %v385, %v257
      %vm702 = vcmp.eq.s32.totalorder %v384, %v258
      %vm703 = vcmp.eq.s32.totalorder %v385, %v258
      %vm704 = vcmp.eq.s32.totalorder %v384, %v259
      %vm705 = vcmp.eq.s32.totalorder %v385, %v259
      %vm706 = vcmp.eq.s32.totalorder %v384, %v260
      %vm707 = vcmp.eq.s32.totalorder %v385, %v260
      %vm708 = vcmp.eq.s32.totalorder %v384, %v261
      %vm709 = vcmp.eq.s32.totalorder %v385, %v261
      %vm710 = vcmp.eq.s32.totalorder %v386, %v256
      %vm711 = vcmp.eq.s32.totalorder %v387, %v256
      %vm712 = vcmp.eq.s32.totalorder %v386, %v257
      %vm713 = vcmp.eq.s32.totalorder %v387, %v257
      %vm714 = vcmp.eq.s32.totalorder %v386, %v258
      %vm715 = vcmp.eq.s32.totalorder %v387, %v258
      %vm716 = vcmp.eq.s32.totalorder %v386, %v259
      %vm717 = vcmp.eq.s32.totalorder %v387, %v259
      %vm718 = vcmp.eq.s32.totalorder %v386, %v260
      %vm719 = vcmp.eq.s32.totalorder %v387, %v260
      %vm720 = vcmp.eq.s32.totalorder %v386, %v261
      %vm721 = vcmp.eq.s32.totalorder %v387, %v261
      %vm722 = vcmp.eq.s32.totalorder %v388, %v256
      %vm723 = vcmp.eq.s32.totalorder %v389, %v256
      %vm724 = vcmp.eq.s32.totalorder %v388, %v257
      %vm725 = vcmp.eq.s32.totalorder %v389, %v257
      %vm726 = vcmp.eq.s32.totalorder %v388, %v258
      %vm727 = vcmp.eq.s32.totalorder %v389, %v258
      %vm728 = vcmp.eq.s32.totalorder %v388, %v259
      %vm729 = vcmp.eq.s32.totalorder %v389, %v259
      %vm730 = vcmp.eq.s32.totalorder %v388, %v260
      %vm731 = vcmp.eq.s32.totalorder %v389, %v260
      %vm732 = vcmp.eq.s32.totalorder %v388, %v261
      %vm733 = vcmp.eq.s32.totalorder %v389, %v261
      %vm734 = vcmp.eq.s32.totalorder %v390, %v256
      %vm735 = vcmp.eq.s32.totalorder %v391, %v256
      %vm736 = vcmp.eq.s32.totalorder %v390, %v257
      %vm737 = vcmp.eq.s32.totalorder %v391, %v257
      %vm738 = vcmp.eq.s32.totalorder %v390, %v258
      %vm739 = vcmp.eq.s32.totalorder %v391, %v258
      %vm740 = vcmp.eq.s32.totalorder %v390, %v259
      %vm741 = vcmp.eq.s32.totalorder %v391, %v259
      %vm742 = vcmp.eq.s32.totalorder %v390, %v260
      %vm743 = vcmp.eq.s32.totalorder %v391, %v260
      %vm744 = vcmp.eq.s32.totalorder %v390, %v261
      %vm745 = vcmp.eq.s32.totalorder %v391, %v261
      %vm746 = vcmp.eq.s32.totalorder %v392, %v256
      %vm747 = vcmp.eq.s32.totalorder %v393, %v256
      %vm748 = vcmp.eq.s32.totalorder %v392, %v257
      %vm749 = vcmp.eq.s32.totalorder %v393, %v257
      %vm750 = vcmp.eq.s32.totalorder %v392, %v258
      %vm751 = vcmp.eq.s32.totalorder %v393, %v258
      %vm752 = vcmp.eq.s32.totalorder %v392, %v259
      %vm753 = vcmp.eq.s32.totalorder %v393, %v259
      %vm754 = vcmp.eq.s32.totalorder %v392, %v260
      %vm755 = vcmp.eq.s32.totalorder %v393, %v260
      %vm756 = vcmp.eq.s32.totalorder %v392, %v261
      %vm757 = vcmp.eq.s32.totalorder %v393, %v261
      %vm758 = vcmp.eq.s32.totalorder %v394, %v256
      %vm759 = vcmp.eq.s32.totalorder %v395, %v256
      %vm760 = vcmp.eq.s32.totalorder %v394, %v257
      %vm761 = vcmp.eq.s32.totalorder %v395, %v257
      %vm762 = vcmp.eq.s32.totalorder %v394, %v258
      %vm763 = vcmp.eq.s32.totalorder %v395, %v258
      %vm764 = vcmp.eq.s32.totalorder %v394, %v259
      %vm765 = vcmp.eq.s32.totalorder %v395, %v259
      %vm766 = vcmp.eq.s32.totalorder %v394, %v260
      %vm767 = vcmp.eq.s32.totalorder %v395, %v260
      %vm768 = vcmp.eq.s32.totalorder %v394, %v261
      %vm769 = vcmp.eq.s32.totalorder %v395, %v261
      %vm770 = vcmp.eq.s32.totalorder %v396, %v256
      %vm771 = vcmp.eq.s32.totalorder %v397, %v256
      %vm772 = vcmp.eq.s32.totalorder %v396, %v257
      %vm773 = vcmp.eq.s32.totalorder %v397, %v257
      %vm774 = vcmp.eq.s32.totalorder %v396, %v258
      %vm775 = vcmp.eq.s32.totalorder %v397, %v258
      %vm776 = vcmp.eq.s32.totalorder %v396, %v259
      %vm777 = vcmp.eq.s32.totalorder %v397, %v259
      %vm778 = vcmp.eq.s32.totalorder %v396, %v260
      %vm779 = vcmp.eq.s32.totalorder %v397, %v260
      %vm780 = vcmp.eq.s32.totalorder %v396, %v261
      %vm781 = vcmp.eq.s32.totalorder %v397, %v261
      %v782 = vsel %vm398, 1, 0
      %v783 = vsel %vm399, 1, 0
      %v784 = vsel %vm400, 1, 0
      %v785 = vsel %vm401, 1, 0
      %v786 = vsel %vm402, 1, 0
      %v787 = vsel %vm403, 1, 0
      %v788 = vsel %vm404, 1, 0
      %v789 = vsel %vm405, 1, 0
      %v790 = vsel %vm406, 1, 0
      %v791 = vsel %vm407, 1, 0
      %v792 = vsel %vm408, 1, 0
      %v793 = vsel %vm409, 1, 0
      %v794 = vsel %vm410, 1, 0
      %v795 = vsel %vm411, 1, 0
      %v796 = vsel %vm412, 1, 0
      %v797 = vsel %vm413, 1, 0
      %v798 = vsel %vm414, 1, 0
      %v799 = vsel %vm415, 1, 0
      %v800 = vsel %vm416, 1, 0
      %v801 = vsel %vm417, 1, 0
      %v802 = vsel %vm418, 1, 0
      %v803 = vsel %vm419, 1, 0
      %v804 = vsel %vm420, 1, 0
      %v805 = vsel %vm421, 1, 0
      %v806 = vsel %vm422, 1, 0
      %v807 = vsel %vm423, 1, 0
      %v808 = vsel %vm424, 1, 0
      %v809 = vsel %vm425, 1, 0
      %v810 = vsel %vm426, 1, 0
      %v811 = vsel %vm427, 1, 0
      %v812 = vsel %vm428, 1, 0
      %v813 = vsel %vm429, 1, 0
      %v814 = vsel %vm430, 1, 0
      %v815 = vsel %vm431, 1, 0
      %v816 = vsel %vm432, 1, 0
      %v817 = vsel %vm433, 1, 0
      %v818 = vsel %vm434, 1, 0
      %v819 = vsel %vm435, 1, 0
      %v820 = vsel %vm436, 1, 0
      %v821 = vsel %vm437, 1, 0
      %v822 = vsel %vm438, 1, 0
      %v823 = vsel %vm439, 1, 0
      %v824 = vsel %vm440, 1, 0
      %v825 = vsel %vm441, 1, 0
      %v826 = vsel %vm442, 1, 0
      %v827 = vsel %vm443, 1, 0
      %v828 = vsel %vm444, 1, 0
      %v829 = vsel %vm445, 1, 0
      %v830 = vsel %vm446, 1, 0
      %v831 = vsel %vm447, 1, 0
      %v832 = vsel %vm448, 1, 0
      %v833 = vsel %vm449, 1, 0
      %v834 = vsel %vm450, 1, 0
      %v835 = vsel %vm451, 1, 0
      %v836 = vsel %vm452, 1, 0
      %v837 = vsel %vm453, 1, 0
      %v838 = vsel %vm454, 1, 0
      %v839 = vsel %vm455, 1, 0
      %v840 = vsel %vm456, 1, 0
      %v841 = vsel %vm457, 1, 0
      %v842 = vsel %vm458, 1, 0
      %v843 = vsel %vm459, 1, 0
      %v844 = vsel %vm460, 1, 0
      %v845 = vsel %vm461, 1, 0
      %v846 = vsel %vm462, 1, 0
      %v847 = vsel %vm463, 1, 0
      %v848 = vsel %vm464, 1, 0
      %v849 = vsel %vm465, 1, 0
      %v850 = vsel %vm466, 1, 0
      %v851 = vsel %vm467, 1, 0
      %v852 = vsel %vm468, 1, 0
      %v853 = vsel %vm469, 1, 0
      %v854 = vsel %vm470, 1, 0
      %v855 = vsel %vm471, 1, 0
      %v856 = vsel %vm472, 1, 0
      %v857 = vsel %vm473, 1, 0
      %v858 = vsel %vm474, 1, 0
      %v859 = vsel %vm475, 1, 0
      %v860 = vsel %vm476, 1, 0
      %v861 = vsel %vm477, 1, 0
      %v862 = vsel %vm478, 1, 0
      %v863 = vsel %vm479, 1, 0
      %v864 = vsel %vm480, 1, 0
      %v865 = vsel %vm481, 1, 0
      %v866 = vsel %vm482, 1, 0
      %v867 = vsel %vm483, 1, 0
      %v868 = vsel %vm484, 1, 0
      %v869 = vsel %vm485, 1, 0
      %v870 = vsel %vm486, 1, 0
      %v871 = vsel %vm487, 1, 0
      %v872 = vsel %vm488, 1, 0
      %v873 = vsel %vm489, 1, 0
      %v874 = vsel %vm490, 1, 0
      %v875 = vsel %vm491, 1, 0
      %v876 = vsel %vm492, 1, 0
      %v877 = vsel %vm493, 1, 0
      %v878 = vsel %vm494, 1, 0
      %v879 = vsel %vm495, 1, 0
      %v880 = vsel %vm496, 1, 0
      %v881 = vsel %vm497, 1, 0
      %v882 = vsel %vm498, 1, 0
      %v883 = vsel %vm499, 1, 0
      %v884 = vsel %vm500, 1, 0
      %v885 = vsel %vm501, 1, 0
      %v886 = vsel %vm502, 1, 0
      %v887 = vsel %vm503, 1, 0
      %v888 = vsel %vm504, 1, 0
      %v889 = vsel %vm505, 1, 0
      %v890 = vsel %vm506, 1, 0
      %v891 = vsel %vm507, 1, 0
      %v892 = vsel %vm508, 1, 0
      %v893 = vsel %vm509, 1, 0
      %v894 = vsel %vm510, 1, 0
      %v895 = vsel %vm511, 1, 0
      %v896 = vsel %vm512, 1, 0
      %v897 = vsel %vm513, 1, 0
      %v898 = vsel %vm514, 1, 0
      %v899 = vsel %vm515, 1, 0
      %v900 = vsel %vm516, 1, 0
      %v901 = vsel %vm517, 1, 0
      %v902 = vsel %vm518, 1, 0
      %v903 = vsel %vm519, 1, 0
      %v904 = vsel %vm520, 1, 0
      %v905 = vsel %vm521, 1, 0
      %v906 = vsel %vm522, 1, 0
      %v907 = vsel %vm523, 1, 0
      %v908 = vsel %vm524, 1, 0
      %v909 = vsel %vm525, 1, 0
      %v910 = vsel %vm526, 1, 0
      %v911 = vsel %vm527, 1, 0
      %v912 = vsel %vm528, 1, 0
      %v913 = vsel %vm529, 1, 0
      %v914 = vsel %vm530, 1, 0
      %v915 = vsel %vm531, 1, 0
      %v916 = vsel %vm532, 1, 0
      %v917 = vsel %vm533, 1, 0
      %v918 = vsel %vm534, 1, 0
      %v919 = vsel %vm535, 1, 0
      %v920 = vsel %vm536, 1, 0
      %v921 = vsel %vm537, 1, 0
      %v922 = vsel %vm538, 1, 0
      %v923 = vsel %vm539, 1, 0
      %v924 = vsel %vm540, 1, 0
      %v925 = vsel %vm541, 1, 0
      %v926 = vsel %vm542, 1, 0
      %v927 = vsel %vm543, 1, 0
      %v928 = vsel %vm544, 1, 0
      %v929 = vsel %vm545, 1, 0
      %v930 = vsel %vm546, 1, 0
      %v931 = vsel %vm547, 1, 0
      %v932 = vsel %vm548, 1, 0
      %v933 = vsel %vm549, 1, 0
      %v934 = vsel %vm550, 1, 0
      %v935 = vsel %vm551, 1, 0
      %v936 = vsel %vm552, 1, 0
      %v937 = vsel %vm553, 1, 0
      %v938 = vsel %vm554, 1, 0
      %v939 = vsel %vm555, 1, 0
      %v940 = vsel %vm556, 1, 0
      %v941 = vsel %vm557, 1, 0
      %v942 = vsel %vm558, 1, 0
      %v943 = vsel %vm559, 1, 0
      %v944 = vsel %vm560, 1, 0
      %v945 = vsel %vm561, 1, 0
      %v946 = vsel %vm562, 1, 0
      %v947 = vsel %vm563, 1, 0
      %v948 = vsel %vm564, 1, 0
      %v949 = vsel %vm565, 1, 0
      %v950 = vsel %vm566, 1, 0
      %v951 = vsel %vm567, 1, 0
      %v952 = vsel %vm568, 1, 0
      %v953 = vsel %vm569, 1, 0
      %v954 = vsel %vm570, 1, 0
      %v955 = vsel %vm571, 1, 0
      %v956 = vsel %vm572, 1, 0
      %v957 = vsel %vm573, 1, 0
      %v958 = vsel %vm574, 1, 0
      %v959 = vsel %vm575, 1, 0
      %v960 = vsel %vm576, 1, 0
      %v961 = vsel %vm577, 1, 0
      %v962 = vsel %vm578, 1, 0
      %v963 = vsel %vm579, 1, 0
      %v964 = vsel %vm580, 1, 0
      %v965 = vsel %vm581, 1, 0
      %v966 = vsel %vm582, 1, 0
      %v967 = vsel %vm583, 1, 0
      %v968 = vsel %vm584, 1, 0
      %v969 = vsel %vm585, 1, 0
      %v970 = vsel %vm586, 1, 0
      %v971 = vsel %vm587, 1, 0
      %v972 = vsel %vm588, 1, 0
      %v973 = vsel %vm589, 1, 0
      %v974 = vsel %vm590, 1, 0
      %v975 = vsel %vm591, 1, 0
      %v976 = vsel %vm592, 1, 0
      %v977 = vsel %vm593, 1, 0
      %v978 = vsel %vm594, 1, 0
      %v979 = vsel %vm595, 1, 0
      %v980 = vsel %vm596, 1, 0
      %v981 = vsel %vm597, 1, 0
      %v982 = vsel %vm598, 1, 0
      %v983 = vsel %vm599, 1, 0
      %v984 = vsel %vm600, 1, 0
      %v985 = vsel %vm601, 1, 0
      %v986 = vsel %vm602, 1, 0
      %v987 = vsel %vm603, 1, 0
      %v988 = vsel %vm604, 1, 0
      %v989 = vsel %vm605, 1, 0
      %v990 = vsel %vm606, 1, 0
      %v991 = vsel %vm607, 1, 0
      %v992 = vsel %vm608, 1, 0
      %v993 = vsel %vm609, 1, 0
      %v994 = vsel %vm610, 1, 0
      %v995 = vsel %vm611, 1, 0
      %v996 = vsel %vm612, 1, 0
      %v997 = vsel %vm613, 1, 0
      %v998 = vsel %vm614, 1, 0
      %v999 = vsel %vm615, 1, 0
      %v1000 = vsel %vm616, 1, 0
      %v1001 = vsel %vm617, 1, 0
      %v1002 = vsel %vm618, 1, 0
      %v1003 = vsel %vm619, 1, 0
      %v1004 = vsel %vm620, 1, 0
      %v1005 = vsel %vm621, 1, 0
      %v1006 = vsel %vm622, 1, 0
      %v1007 = vsel %vm623, 1, 0
      %v1008 = vsel %vm624, 1, 0
      %v1009 = vsel %vm625, 1, 0
      %v1010 = vsel %vm626, 1, 0
      %v1011 = vsel %vm627, 1, 0
      %v1012 = vsel %vm628, 1, 0
      %v1013 = vsel %vm629, 1, 0
      %v1014 = vsel %vm630, 1, 0
      %v1015 = vsel %vm631, 1, 0
      %v1016 = vsel %vm632, 1, 0
      %v1017 = vsel %vm633, 1, 0
      %v1018 = vsel %vm634, 1, 0
      %v1019 = vsel %vm635, 1, 0
      %v1020 = vsel %vm636, 1, 0
      %v1021 = vsel %vm637, 1, 0
      %v1022 = vsel %vm638, 1, 0
      %v1023 = vsel %vm639, 1, 0
      %v1024 = vsel %vm640, 1, 0
      %v1025 = vsel %vm641, 1, 0
      %v1026 = vsel %vm642, 1, 0
      %v1027 = vsel %vm643, 1, 0
      %v1028 = vsel %vm644, 1, 0
      %v1029 = vsel %vm645, 1, 0
      %v1030 = vsel %vm646, 1, 0
      %v1031 = vsel %vm647, 1, 0
      %v1032 = vsel %vm648, 1, 0
      %v1033 = vsel %vm649, 1, 0
      %v1034 = vsel %vm650, 1, 0
      %v1035 = vsel %vm651, 1, 0
      %v1036 = vsel %vm652, 1, 0
      %v1037 = vsel %vm653, 1, 0
      %v1038 = vsel %vm654, 1, 0
      %v1039 = vsel %vm655, 1, 0
      %v1040 = vsel %vm656, 1, 0
      %v1041 = vsel %vm657, 1, 0
      %v1042 = vsel %vm658, 1, 0
      %v1043 = vsel %vm659, 1, 0
      %v1044 = vsel %vm660, 1, 0
      %v1045 = vsel %vm661, 1, 0
      %v1046 = vsel %vm662, 1, 0
      %v1047 = vsel %vm663, 1, 0
      %v1048 = vsel %vm664, 1, 0
      %v1049 = vsel %vm665, 1, 0
      %v1050 = vsel %vm666, 1, 0
      %v1051 = vsel %vm667, 1, 0
      %v1052 = vsel %vm668, 1, 0
      %v1053 = vsel %vm669, 1, 0
      %v1054 = vsel %vm670, 1, 0
      %v1055 = vsel %vm671, 1, 0
      %v1056 = vsel %vm672, 1, 0
      %v1057 = vsel %vm673, 1, 0
      %v1058 = vsel %vm674, 1, 0
      %v1059 = vsel %vm675, 1, 0
      %v1060 = vsel %vm676, 1, 0
      %v1061 = vsel %vm677, 1, 0
      %v1062 = vsel %vm678, 1, 0
      %v1063 = vsel %vm679, 1, 0
      %v1064 = vsel %vm680, 1, 0
      %v1065 = vsel %vm681, 1, 0
      %v1066 = vsel %vm682, 1, 0
      %v1067 = vsel %vm683, 1, 0
      %v1068 = vsel %vm684, 1, 0
      %v1069 = vsel %vm685, 1, 0
      %v1070 = vsel %vm686, 1, 0
      %v1071 = vsel %vm687, 1, 0
      %v1072 = vsel %vm688, 1, 0
      %v1073 = vsel %vm689, 1, 0
      %v1074 = vsel %vm690, 1, 0
      %v1075 = vsel %vm691, 1, 0
      %v1076 = vsel %vm692, 1, 0
      %v1077 = vsel %vm693, 1, 0
      %v1078 = vsel %vm694, 1, 0
      %v1079 = vsel %vm695, 1, 0
      %v1080 = vsel %vm696, 1, 0
      %v1081 = vsel %vm697, 1, 0
      %v1082 = vsel %vm698, 1, 0
      %v1083 = vsel %vm699, 1, 0
      %v1084 = vsel %vm700, 1, 0
      %v1085 = vsel %vm701, 1, 0
      %v1086 = vsel %vm702, 1, 0
      %v1087 = vsel %vm703, 1, 0
      %v1088 = vsel %vm704, 1, 0
      %v1089 = vsel %vm705, 1, 0
      %v1090 = vsel %vm706, 1, 0
      %v1091 = vsel %vm707, 1, 0
      %v1092 = vsel %vm708, 1, 0
      %v1093 = vsel %vm709, 1, 0
      %v1094 = vsel %vm710, 1, 0
      %v1095 = vsel %vm711, 1, 0
      %v1096 = vsel %vm712, 1, 0
      %v1097 = vsel %vm713, 1, 0
      %v1098 = vsel %vm714, 1, 0
      %v1099 = vsel %vm715, 1, 0
      %v1100 = vsel %vm716, 1, 0
      %v1101 = vsel %vm717, 1, 0
      %v1102 = vsel %vm718, 1, 0
      %v1103 = vsel %vm719, 1, 0
      %v1104 = vsel %vm720, 1, 0
      %v1105 = vsel %vm721, 1, 0
      %v1106 = vsel %vm722, 1, 0
      %v1107 = vsel %vm723, 1, 0
      %v1108 = vsel %vm724, 1, 0
      %v1109 = vsel %vm725, 1, 0
      %v1110 = vsel %vm726, 1, 0
      %v1111 = vsel %vm727, 1, 0
      %v1112 = vsel %vm728, 1, 0
      %v1113 = vsel %vm729, 1, 0
      %v1114 = vsel %vm730, 1, 0
      %v1115 = vsel %vm731, 1, 0
      %v1116 = vsel %vm732, 1, 0
      %v1117 = vsel %vm733, 1, 0
      %v1118 = vsel %vm734, 1, 0
      %v1119 = vsel %vm735, 1, 0
      %v1120 = vsel %vm736, 1, 0
      %v1121 = vsel %vm737, 1, 0
      %v1122 = vsel %vm738, 1, 0
      %v1123 = vsel %vm739, 1, 0
      %v1124 = vsel %vm740, 1, 0
      %v1125 = vsel %vm741, 1, 0
      %v1126 = vsel %vm742, 1, 0
      %v1127 = vsel %vm743, 1, 0
      %v1128 = vsel %vm744, 1, 0
      %v1129 = vsel %vm745, 1, 0
      %v1130 = vsel %vm746, 1, 0
      %v1131 = vsel %vm747, 1, 0
      %v1132 = vsel %vm748, 1, 0
      %v1133 = vsel %vm749, 1, 0
      %v1134 = vsel %vm750, 1, 0
      %v1135 = vsel %vm751, 1, 0
      %v1136 = vsel %vm752, 1, 0
      %v1137 = vsel %vm753, 1, 0
      %v1138 = vsel %vm754, 1, 0
      %v1139 = vsel %vm755, 1, 0
      %v1140 = vsel %vm756, 1, 0
      %v1141 = vsel %vm757, 1, 0
      %v1142 = vsel %vm758, 1, 0
      %v1143 = vsel %vm759, 1, 0
      %v1144 = vsel %vm760, 1, 0
      %v1145 = vsel %vm761, 1, 0
      %v1146 = vsel %vm762, 1, 0
      %v1147 = vsel %vm763, 1, 0
      %v1148 = vsel %vm764, 1, 0
      %v1149 = vsel %vm765, 1, 0
      %v1150 = vsel %vm766, 1, 0
      %v1151 = vsel %vm767, 1, 0
      %v1152 = vsel %vm768, 1, 0
      %v1153 = vsel %vm769, 1, 0
      %v1154 = vsel %vm770, 1, 0
      %v1155 = vsel %vm771, 1, 0
      %v1156 = vsel %vm772, 1, 0
      %v1157 = vsel %vm773, 1, 0
      %v1158 = vsel %vm774, 1, 0
      %v1159 = vsel %vm775, 1, 0
      %v1160 = vsel %vm776, 1, 0
      %v1161 = vsel %vm777, 1, 0
      %v1162 = vsel %vm778, 1, 0
      %v1163 = vsel %vm779, 1, 0
      %v1164 = vsel %vm780, 1, 0
      %v1165 = vsel %vm781, 1, 0
      %v1166 = vcvt.s32.f32 %v782
      %v1167 = vcvt.s32.f32 %v783
      %v1168 = vcvt.s32.f32 %v784
      %v1169 = vcvt.s32.f32 %v785
      %v1170 = vcvt.s32.f32 %v786
      %v1171 = vcvt.s32.f32 %v787
      %v1172 = vcvt.s32.f32 %v788
      %v1173 = vcvt.s32.f32 %v789
      %v1174 = vcvt.s32.f32 %v790
      %v1175 = vcvt.s32.f32 %v791
      %v1176 = vcvt.s32.f32 %v792
      %v1177 = vcvt.s32.f32 %v793
      %v1178 = vcvt.s32.f32 %v794
      %v1179 = vcvt.s32.f32 %v795
      %v1180 = vcvt.s32.f32 %v796
      %v1181 = vcvt.s32.f32 %v797
      %v1182 = vcvt.s32.f32 %v798
      %v1183 = vcvt.s32.f32 %v799
      %v1184 = vcvt.s32.f32 %v800
      %v1185 = vcvt.s32.f32 %v801
      %v1186 = vcvt.s32.f32 %v802
      %v1187 = vcvt.s32.f32 %v803
      %v1188 = vcvt.s32.f32 %v804
      %v1189 = vcvt.s32.f32 %v805
      %v1190 = vcvt.s32.f32 %v806
      %v1191 = vcvt.s32.f32 %v807
      %v1192 = vcvt.s32.f32 %v808
      %v1193 = vcvt.s32.f32 %v809
      %v1194 = vcvt.s32.f32 %v810
      %v1195 = vcvt.s32.f32 %v811
      %v1196 = vcvt.s32.f32 %v812
      %v1197 = vcvt.s32.f32 %v813
      %v1198 = vcvt.s32.f32 %v814
      %v1199 = vcvt.s32.f32 %v815
      %v1200 = vcvt.s32.f32 %v816
      %v1201 = vcvt.s32.f32 %v817
      %v1202 = vcvt.s32.f32 %v818
      %v1203 = vcvt.s32.f32 %v819
      %v1204 = vcvt.s32.f32 %v820
      %v1205 = vcvt.s32.f32 %v821
      %v1206 = vcvt.s32.f32 %v822
      %v1207 = vcvt.s32.f32 %v823
      %v1208 = vcvt.s32.f32 %v824
      %v1209 = vcvt.s32.f32 %v825
      %v1210 = vcvt.s32.f32 %v826
      %v1211 = vcvt.s32.f32 %v827
      %v1212 = vcvt.s32.f32 %v828
      %v1213 = vcvt.s32.f32 %v829
      %v1214 = vcvt.s32.f32 %v830
      %v1215 = vcvt.s32.f32 %v831
      %v1216 = vcvt.s32.f32 %v832
      %v1217 = vcvt.s32.f32 %v833
      %v1218 = vcvt.s32.f32 %v834
      %v1219 = vcvt.s32.f32 %v835
      %v1220 = vcvt.s32.f32 %v836
      %v1221 = vcvt.s32.f32 %v837
      %v1222 = vcvt.s32.f32 %v838
      %v1223 = vcvt.s32.f32 %v839
      %v1224 = vcvt.s32.f32 %v840
      %v1225 = vcvt.s32.f32 %v841
      %v1226 = vcvt.s32.f32 %v842
      %v1227 = vcvt.s32.f32 %v843
      %v1228 = vcvt.s32.f32 %v844
      %v1229 = vcvt.s32.f32 %v845
      %v1230 = vcvt.s32.f32 %v846
      %v1231 = vcvt.s32.f32 %v847
      %v1232 = vcvt.s32.f32 %v848
      %v1233 = vcvt.s32.f32 %v849
      %v1234 = vcvt.s32.f32 %v850
      %v1235 = vcvt.s32.f32 %v851
      %v1236 = vcvt.s32.f32 %v852
      %v1237 = vcvt.s32.f32 %v853
      %v1238 = vcvt.s32.f32 %v854
      %v1239 = vcvt.s32.f32 %v855
      %v1240 = vcvt.s32.f32 %v856
      %v1241 = vcvt.s32.f32 %v857
      %v1242 = vcvt.s32.f32 %v858
      %v1243 = vcvt.s32.f32 %v859
      %v1244 = vcvt.s32.f32 %v860
      %v1245 = vcvt.s32.f32 %v861
      %v1246 = vcvt.s32.f32 %v862
      %v1247 = vcvt.s32.f32 %v863
      %v1248 = vcvt.s32.f32 %v864
      %v1249 = vcvt.s32.f32 %v865
      %v1250 = vcvt.s32.f32 %v866
      %v1251 = vcvt.s32.f32 %v867
      %v1252 = vcvt.s32.f32 %v868
      %v1253 = vcvt.s32.f32 %v869
      %v1254 = vcvt.s32.f32 %v870
      %v1255 = vcvt.s32.f32 %v871
      %v1256 = vcvt.s32.f32 %v872
      %v1257 = vcvt.s32.f32 %v873
      %v1258 = vcvt.s32.f32 %v874
      %v1259 = vcvt.s32.f32 %v875
      %v1260 = vcvt.s32.f32 %v876
      %v1261 = vcvt.s32.f32 %v877
      %v1262 = vcvt.s32.f32 %v878
      %v1263 = vcvt.s32.f32 %v879
      %v1264 = vcvt.s32.f32 %v880
      %v1265 = vcvt.s32.f32 %v881
      %v1266 = vcvt.s32.f32 %v882
      %v1267 = vcvt.s32.f32 %v883
      %v1268 = vcvt.s32.f32 %v884
      %v1269 = vcvt.s32.f32 %v885
      %v1270 = vcvt.s32.f32 %v886
      %v1271 = vcvt.s32.f32 %v887
      %v1272 = vcvt.s32.f32 %v888
      %v1273 = vcvt.s32.f32 %v889
      %v1274 = vcvt.s32.f32 %v890
      %v1275 = vcvt.s32.f32 %v891
      %v1276 = vcvt.s32.f32 %v892
      %v1277 = vcvt.s32.f32 %v893
      %v1278 = vcvt.s32.f32 %v894
      %v1279 = vcvt.s32.f32 %v895
      %v1280 = vcvt.s32.f32 %v896
      %v1281 = vcvt.s32.f32 %v897
      %v1282 = vcvt.s32.f32 %v898
      %v1283 = vcvt.s32.f32 %v899
      %v1284 = vcvt.s32.f32 %v900
      %v1285 = vcvt.s32.f32 %v901
      %v1286 = vcvt.s32.f32 %v902
      %v1287 = vcvt.s32.f32 %v903
      %v1288 = vcvt.s32.f32 %v904
      %v1289 = vcvt.s32.f32 %v905
      %v1290 = vcvt.s32.f32 %v906
      %v1291 = vcvt.s32.f32 %v907
      %v1292 = vcvt.s32.f32 %v908
      %v1293 = vcvt.s32.f32 %v909
      %v1294 = vcvt.s32.f32 %v910
      %v1295 = vcvt.s32.f32 %v911
      %v1296 = vcvt.s32.f32 %v912
      %v1297 = vcvt.s32.f32 %v913
      %v1298 = vcvt.s32.f32 %v914
      %v1299 = vcvt.s32.f32 %v915
      %v1300 = vcvt.s32.f32 %v916
      %v1301 = vcvt.s32.f32 %v917
      %v1302 = vcvt.s32.f32 %v918
      %v1303 = vcvt.s32.f32 %v919
      %v1304 = vcvt.s32.f32 %v920
      %v1305 = vcvt.s32.f32 %v921
      %v1306 = vcvt.s32.f32 %v922
      %v1307 = vcvt.s32.f32 %v923
      %v1308 = vcvt.s32.f32 %v924
      %v1309 = vcvt.s32.f32 %v925
      %v1310 = vcvt.s32.f32 %v926
      %v1311 = vcvt.s32.f32 %v927
      %v1312 = vcvt.s32.f32 %v928
      %v1313 = vcvt.s32.f32 %v929
      %v1314 = vcvt.s32.f32 %v930
      %v1315 = vcvt.s32.f32 %v931
      %v1316 = vcvt.s32.f32 %v932
      %v1317 = vcvt.s32.f32 %v933
      %v1318 = vcvt.s32.f32 %v934
      %v1319 = vcvt.s32.f32 %v935
      %v1320 = vcvt.s32.f32 %v936
      %v1321 = vcvt.s32.f32 %v937
      %v1322 = vcvt.s32.f32 %v938
      %v1323 = vcvt.s32.f32 %v939
      %v1324 = vcvt.s32.f32 %v940
      %v1325 = vcvt.s32.f32 %v941
      %v1326 = vcvt.s32.f32 %v942
      %v1327 = vcvt.s32.f32 %v943
      %v1328 = vcvt.s32.f32 %v944
      %v1329 = vcvt.s32.f32 %v945
      %v1330 = vcvt.s32.f32 %v946
      %v1331 = vcvt.s32.f32 %v947
      %v1332 = vcvt.s32.f32 %v948
      %v1333 = vcvt.s32.f32 %v949
      %v1334 = vcvt.s32.f32 %v950
      %v1335 = vcvt.s32.f32 %v951
      %v1336 = vcvt.s32.f32 %v952
      %v1337 = vcvt.s32.f32 %v953
      %v1338 = vcvt.s32.f32 %v954
      %v1339 = vcvt.s32.f32 %v955
      %v1340 = vcvt.s32.f32 %v956
      %v1341 = vcvt.s32.f32 %v957
      %v1342 = vcvt.s32.f32 %v958
      %v1343 = vcvt.s32.f32 %v959
      %v1344 = vcvt.s32.f32 %v960
      %v1345 = vcvt.s32.f32 %v961
      %v1346 = vcvt.s32.f32 %v962
      %v1347 = vcvt.s32.f32 %v963
      %v1348 = vcvt.s32.f32 %v964
      %v1349 = vcvt.s32.f32 %v965
      %v1350 = vcvt.s32.f32 %v966
      %v1351 = vcvt.s32.f32 %v967
      %v1352 = vcvt.s32.f32 %v968
      %v1353 = vcvt.s32.f32 %v969
      %v1354 = vcvt.s32.f32 %v970
      %v1355 = vcvt.s32.f32 %v971
      %v1356 = vcvt.s32.f32 %v972
      %v1357 = vcvt.s32.f32 %v973
      %v1358 = vcvt.s32.f32 %v974
      %v1359 = vcvt.s32.f32 %v975
      %v1360 = vcvt.s32.f32 %v976
      %v1361 = vcvt.s32.f32 %v977
      %v1362 = vcvt.s32.f32 %v978
      %v1363 = vcvt.s32.f32 %v979
      %v1364 = vcvt.s32.f32 %v980
      %v1365 = vcvt.s32.f32 %v981
      %v1366 = vcvt.s32.f32 %v982
      %v1367 = vcvt.s32.f32 %v983
      %v1368 = vcvt.s32.f32 %v984
      %v1369 = vcvt.s32.f32 %v985
      %v1370 = vcvt.s32.f32 %v986
      %v1371 = vcvt.s32.f32 %v987
      %v1372 = vcvt.s32.f32 %v988
      %v1373 = vcvt.s32.f32 %v989
      %v1374 = vcvt.s32.f32 %v990
      %v1375 = vcvt.s32.f32 %v991
      %v1376 = vcvt.s32.f32 %v992
      %v1377 = vcvt.s32.f32 %v993
      %v1378 = vcvt.s32.f32 %v994
      %v1379 = vcvt.s32.f32 %v995
      %v1380 = vcvt.s32.f32 %v996
      %v1381 = vcvt.s32.f32 %v997
      %v1382 = vcvt.s32.f32 %v998
      %v1383 = vcvt.s32.f32 %v999
      %v1384 = vcvt.s32.f32 %v1000
      %v1385 = vcvt.s32.f32 %v1001
      %v1386 = vcvt.s32.f32 %v1002
      %v1387 = vcvt.s32.f32 %v1003
      %v1388 = vcvt.s32.f32 %v1004
      %v1389 = vcvt.s32.f32 %v1005
      %v1390 = vcvt.s32.f32 %v1006
      %v1391 = vcvt.s32.f32 %v1007
      %v1392 = vcvt.s32.f32 %v1008
      %v1393 = vcvt.s32.f32 %v1009
      %v1394 = vcvt.s32.f32 %v1010
      %v1395 = vcvt.s32.f32 %v1011
      %v1396 = vcvt.s32.f32 %v1012
      %v1397 = vcvt.s32.f32 %v1013
      %v1398 = vcvt.s32.f32 %v1014
      %v1399 = vcvt.s32.f32 %v1015
      %v1400 = vcvt.s32.f32 %v1016
      %v1401 = vcvt.s32.f32 %v1017
      %v1402 = vcvt.s32.f32 %v1018
      %v1403 = vcvt.s32.f32 %v1019
      %v1404 = vcvt.s32.f32 %v1020
      %v1405 = vcvt.s32.f32 %v1021
      %v1406 = vcvt.s32.f32 %v1022
      %v1407 = vcvt.s32.f32 %v1023
      %v1408 = vcvt.s32.f32 %v1024
      %v1409 = vcvt.s32.f32 %v1025
      %v1410 = vcvt.s32.f32 %v1026
      %v1411 = vcvt.s32.f32 %v1027
      %v1412 = vcvt.s32.f32 %v1028
      %v1413 = vcvt.s32.f32 %v1029
      %v1414 = vcvt.s32.f32 %v1030
      %v1415 = vcvt.s32.f32 %v1031
      %v1416 = vcvt.s32.f32 %v1032
      %v1417 = vcvt.s32.f32 %v1033
      %v1418 = vcvt.s32.f32 %v1034
      %v1419 = vcvt.s32.f32 %v1035
      %v1420 = vcvt.s32.f32 %v1036
      %v1421 = vcvt.s32.f32 %v1037
      %v1422 = vcvt.s32.f32 %v1038
      %v1423 = vcvt.s32.f32 %v1039
      %v1424 = vcvt.s32.f32 %v1040
      %v1425 = vcvt.s32.f32 %v1041
      %v1426 = vcvt.s32.f32 %v1042
      %v1427 = vcvt.s32.f32 %v1043
      %v1428 = vcvt.s32.f32 %v1044
      %v1429 = vcvt.s32.f32 %v1045
      %v1430 = vcvt.s32.f32 %v1046
      %v1431 = vcvt.s32.f32 %v1047
      %v1432 = vcvt.s32.f32 %v1048
      %v1433 = vcvt.s32.f32 %v1049
      %v1434 = vcvt.s32.f32 %v1050
      %v1435 = vcvt.s32.f32 %v1051
      %v1436 = vcvt.s32.f32 %v1052
      %v1437 = vcvt.s32.f32 %v1053
      %v1438 = vcvt.s32.f32 %v1054
      %v1439 = vcvt.s32.f32 %v1055
      %v1440 = vcvt.s32.f32 %v1056
      %v1441 = vcvt.s32.f32 %v1057
      %v1442 = vcvt.s32.f32 %v1058
      %v1443 = vcvt.s32.f32 %v1059
      %v1444 = vcvt.s32.f32 %v1060
      %v1445 = vcvt.s32.f32 %v1061
      %v1446 = vcvt.s32.f32 %v1062
      %v1447 = vcvt.s32.f32 %v1063
      %v1448 = vcvt.s32.f32 %v1064
      %v1449 = vcvt.s32.f32 %v1065
      %v1450 = vcvt.s32.f32 %v1066
      %v1451 = vcvt.s32.f32 %v1067
      %v1452 = vcvt.s32.f32 %v1068
      %v1453 = vcvt.s32.f32 %v1069
      %v1454 = vcvt.s32.f32 %v1070
      %v1455 = vcvt.s32.f32 %v1071
      %v1456 = vcvt.s32.f32 %v1072
      %v1457 = vcvt.s32.f32 %v1073
      %v1458 = vcvt.s32.f32 %v1074
      %v1459 = vcvt.s32.f32 %v1075
      %v1460 = vcvt.s32.f32 %v1076
      %v1461 = vcvt.s32.f32 %v1077
      %v1462 = vcvt.s32.f32 %v1078
      %v1463 = vcvt.s32.f32 %v1079
      %v1464 = vcvt.s32.f32 %v1080
      %v1465 = vcvt.s32.f32 %v1081
      %v1466 = vcvt.s32.f32 %v1082
      %v1467 = vcvt.s32.f32 %v1083
      %v1468 = vcvt.s32.f32 %v1084
      %v1469 = vcvt.s32.f32 %v1085
      %v1470 = vcvt.s32.f32 %v1086
      %v1471 = vcvt.s32.f32 %v1087
      %v1472 = vcvt.s32.f32 %v1088
      %v1473 = vcvt.s32.f32 %v1089
      %v1474 = vcvt.s32.f32 %v1090
      %v1475 = vcvt.s32.f32 %v1091
      %v1476 = vcvt.s32.f32 %v1092
      %v1477 = vcvt.s32.f32 %v1093
      %v1478 = vcvt.s32.f32 %v1094
      %v1479 = vcvt.s32.f32 %v1095
      %v1480 = vcvt.s32.f32 %v1096
      %v1481 = vcvt.s32.f32 %v1097
      %v1482 = vcvt.s32.f32 %v1098
      %v1483 = vcvt.s32.f32 %v1099
      %v1484 = vcvt.s32.f32 %v1100
      %v1485 = vcvt.s32.f32 %v1101
      %v1486 = vcvt.s32.f32 %v1102
      %v1487 = vcvt.s32.f32 %v1103
      %v1488 = vcvt.s32.f32 %v1104
      %v1489 = vcvt.s32.f32 %v1105
      %v1490 = vcvt.s32.f32 %v1106
      %v1491 = vcvt.s32.f32 %v1107
      %v1492 = vcvt.s32.f32 %v1108
      %v1493 = vcvt.s32.f32 %v1109
      %v1494 = vcvt.s32.f32 %v1110
      %v1495 = vcvt.s32.f32 %v1111
      %v1496 = vcvt.s32.f32 %v1112
      %v1497 = vcvt.s32.f32 %v1113
      %v1498 = vcvt.s32.f32 %v1114
      %v1499 = vcvt.s32.f32 %v1115
      %v1500 = vcvt.s32.f32 %v1116
      %v1501 = vcvt.s32.f32 %v1117
      %v1502 = vcvt.s32.f32 %v1118
      %v1503 = vcvt.s32.f32 %v1119
      %v1504 = vcvt.s32.f32 %v1120
      %v1505 = vcvt.s32.f32 %v1121
      %v1506 = vcvt.s32.f32 %v1122
      %v1507 = vcvt.s32.f32 %v1123
      %v1508 = vcvt.s32.f32 %v1124
      %v1509 = vcvt.s32.f32 %v1125
      %v1510 = vcvt.s32.f32 %v1126
      %v1511 = vcvt.s32.f32 %v1127
      %v1512 = vcvt.s32.f32 %v1128
      %v1513 = vcvt.s32.f32 %v1129
      %v1514 = vcvt.s32.f32 %v1130
      %v1515 = vcvt.s32.f32 %v1131
      %v1516 = vcvt.s32.f32 %v1132
      %v1517 = vcvt.s32.f32 %v1133
      %v1518 = vcvt.s32.f32 %v1134
      %v1519 = vcvt.s32.f32 %v1135
      %v1520 = vcvt.s32.f32 %v1136
      %v1521 = vcvt.s32.f32 %v1137
      %v1522 = vcvt.s32.f32 %v1138
      %v1523 = vcvt.s32.f32 %v1139
      %v1524 = vcvt.s32.f32 %v1140
      %v1525 = vcvt.s32.f32 %v1141
      %v1526 = vcvt.s32.f32 %v1142
      %v1527 = vcvt.s32.f32 %v1143
      %v1528 = vcvt.s32.f32 %v1144
      %v1529 = vcvt.s32.f32 %v1145
      %v1530 = vcvt.s32.f32 %v1146
      %v1531 = vcvt.s32.f32 %v1147
      %v1532 = vcvt.s32.f32 %v1148
      %v1533 = vcvt.s32.f32 %v1149
      %v1534 = vcvt.s32.f32 %v1150
      %v1535 = vcvt.s32.f32 %v1151
      %v1536 = vcvt.s32.f32 %v1152
      %v1537 = vcvt.s32.f32 %v1153
      %v1538 = vcvt.s32.f32 %v1154
      %v1539 = vcvt.s32.f32 %v1155
      %v1540 = vcvt.s32.f32 %v1156
      %v1541 = vcvt.s32.f32 %v1157
      %v1542 = vcvt.s32.f32 %v1158
      %v1543 = vcvt.s32.f32 %v1159
      %v1544 = vcvt.s32.f32 %v1160
      %v1545 = vcvt.s32.f32 %v1161
      %v1546 = vcvt.s32.f32 %v1162
      %v1547 = vcvt.s32.f32 %v1163
      %v1548 = vcvt.s32.f32 %v1164
      %v1549 = vcvt.s32.f32 %v1165
      %v1550 = vld [vmem:[%s219] sm:$0xff]
      %v1551 = vld [vmem:[%s219 + $0x8] sm:$0xff]
      %1552 = vmatpush.xpose.msra.mxu0 %v1196
      %1553 = vmatpush.xpose.msra.mxu0 %v1194
      %1554 = vmatpush.xpose.msra.mxu0 %v1192
      %1555 = vmatpush.xpose.msra.mxu0 %v1190
      %1556 = vmatpush.xpose.msra.mxu0 %v1188
      %1557 = vmatpush.xpose.msra.mxu0 %v1186
      %1558 = vmatpush.xpose.msra.mxu0 %v1184
      %1559 = vmatpush.xpose.msra.mxu0 %v1182
      %1560 = vmatpush.xpose.msra.mxu0 %v1180
      %1561 = vmatpush.xpose.msra.mxu0 %v1178
      %1562 = vmatpush.xpose.msra.mxu0 %v1176
      %1563 = vmatpush.xpose.msra.mxu0 %v1174
      %1564 = vmatpush.xpose.msra.mxu0 %v1172
      %1565 = vmatpush.xpose.msra.mxu0 %v1170
      %1566 = vmatpush.xpose.msra.mxu0 %v1168
      %1567 = vmatpush.xpose.msra.mxu0 %v1166
      %1568 = vmatmul.f32.gmra.mxu0 %v1550
      %v1569 = vpop.f32.mrf.mxu0
      %v1570 = vadd.f32 0.0, %v1569
      %1571 = vdwg.mxu0
      %1572 = vmatpush.xpose.msra.mxu0 %v1197
      %1573 = vmatpush.xpose.msra.mxu0 %v1195
      %1574 = vmatpush.xpose.msra.mxu0 %v1193
      %1575 = vmatpush.xpose.msra.mxu0 %v1191
      %1576 = vmatpush.xpose.msra.mxu0 %v1189
      %1577 = vmatpush.xpose.msra.mxu0 %v1187
      %1578 = vmatpush.xpose.msra.mxu0 %v1185
      %1579 = vmatpush.xpose.msra.mxu0 %v1183
      %1580 = vmatpush.xpose.msra.mxu0 %v1181
      %1581 = vmatpush.xpose.msra.mxu0 %v1179
      %1582 = vmatpush.xpose.msra.mxu0 %v1177
      %1583 = vmatpush.xpose.msra.mxu0 %v1175
      %1584 = vmatpush.xpose.msra.mxu0 %v1173
      %1585 = vmatpush.xpose.msra.mxu0 %v1171
      %1586 = vmatpush.xpose.msra.mxu0 %v1169
      %1587 = vmatpush.xpose.msra.mxu0 %v1167
      %1588 = vmatmul.f32.gmra.mxu0 %v1551
      %v1589 = vpop.f32.mrf.mxu0
      %v1590 = vadd.f32 %v1570, %v1589
      %1591 = vdwg.mxu0
      %1592 = vmatpush.xpose.msra.mxu0 %v1228
      %1593 = vmatpush.xpose.msra.mxu0 %v1226
      %1594 = vmatpush.xpose.msra.mxu0 %v1224
      %1595 = vmatpush.xpose.msra.mxu0 %v1222
      %1596 = vmatpush.xpose.msra.mxu0 %v1220
      %1597 = vmatpush.xpose.msra.mxu0 %v1218
      %1598 = vmatpush.xpose.msra.mxu0 %v1216
      %1599 = vmatpush.xpose.msra.mxu0 %v1214
      %1600 = vmatpush.xpose.msra.mxu0 %v1212
      %1601 = vmatpush.xpose.msra.mxu0 %v1210
      %1602 = vmatpush.xpose.msra.mxu0 %v1208
      %1603 = vmatpush.xpose.msra.mxu0 %v1206
      %1604 = vmatpush.xpose.msra.mxu0 %v1204
      %1605 = vmatpush.xpose.msra.mxu0 %v1202
      %1606 = vmatpush.xpose.msra.mxu0 %v1200
      %1607 = vmatpush.xpose.msra.mxu0 %v1198
      %1608 = vmatmul.f32.gmra.mxu0 %v1550
      %v1609 = vpop.f32.mrf.mxu0
      %v1610 = vadd.f32 0.0, %v1609
      %1611 = vdwg.mxu0
      %1612 = vmatpush.xpose.msra.mxu0 %v1229
      %1613 = vmatpush.xpose.msra.mxu0 %v1227
      %1614 = vmatpush.xpose.msra.mxu0 %v1225
      %1615 = vmatpush.xpose.msra.mxu0 %v1223
      %1616 = vmatpush.xpose.msra.mxu0 %v1221
      %1617 = vmatpush.xpose.msra.mxu0 %v1219
      %1618 = vmatpush.xpose.msra.mxu0 %v1217
      %1619 = vmatpush.xpose.msra.mxu0 %v1215
      %1620 = vmatpush.xpose.msra.mxu0 %v1213
      %1621 = vmatpush.xpose.msra.mxu0 %v1211
      %1622 = vmatpush.xpose.msra.mxu0 %v1209
      %1623 = vmatpush.xpose.msra.mxu0 %v1207
      %1624 = vmatpush.xpose.msra.mxu0 %v1205
      %1625 = vmatpush.xpose.msra.mxu0 %v1203
      %1626 = vmatpush.xpose.msra.mxu0 %v1201
      %1627 = vmatpush.xpose.msra.mxu0 %v1199
      %1628 = vmatmul.f32.gmra.mxu0 %v1551
      %v1629 = vpop.f32.mrf.mxu0
      %v1630 = vadd.f32 %v1610, %v1629
      %1631 = vdwg.mxu0
      %1632 = vmatpush.xpose.msra.mxu0 %v1260
      %1633 = vmatpush.xpose.msra.mxu0 %v1258
      %1634 = vmatpush.xpose.msra.mxu0 %v1256
      %1635 = vmatpush.xpose.msra.mxu0 %v1254
      %1636 = vmatpush.xpose.msra.mxu0 %v1252
      %1637 = vmatpush.xpose.msra.mxu0 %v1250
      %1638 = vmatpush.xpose.msra.mxu0 %v1248
      %1639 = vmatpush.xpose.msra.mxu0 %v1246
      %1640 = vmatpush.xpose.msra.mxu0 %v1244
      %1641 = vmatpush.xpose.msra.mxu0 %v1242
      %1642 = vmatpush.xpose.msra.mxu0 %v1240
      %1643 = vmatpush.xpose.msra.mxu0 %v1238
      %1644 = vmatpush.xpose.msra.mxu0 %v1236
      %1645 = vmatpush.xpose.msra.mxu0 %v1234
      %1646 = vmatpush.xpose.msra.mxu0 %v1232
      %1647 = vmatpush.xpose.msra.mxu0 %v1230
      %1648 = vmatmul.f32.gmra.mxu0 %v1550
      %v1649 = vpop.f32.mrf.mxu0
      %v1650 = vadd.f32 0.0, %v1649
      %1651 = vdwg.mxu0
      %1652 = vmatpush.xpose.msra.mxu0 %v1261
      %1653 = vmatpush.xpose.msra.mxu0 %v1259
      %1654 = vmatpush.xpose.msra.mxu0 %v1257
      %1655 = vmatpush.xpose.msra.mxu0 %v1255
      %1656 = vmatpush.xpose.msra.mxu0 %v1253
      %1657 = vmatpush.xpose.msra.mxu0 %v1251
      %1658 = vmatpush.xpose.msra.mxu0 %v1249
      %1659 = vmatpush.xpose.msra.mxu0 %v1247
      %1660 = vmatpush.xpose.msra.mxu0 %v1245
      %1661 = vmatpush.xpose.msra.mxu0 %v1243
      %1662 = vmatpush.xpose.msra.mxu0 %v1241
      %1663 = vmatpush.xpose.msra.mxu0 %v1239
      %1664 = vmatpush.xpose.msra.mxu0 %v1237
      %1665 = vmatpush.xpose.msra.mxu0 %v1235
      %1666 = vmatpush.xpose.msra.mxu0 %v1233
      %1667 = vmatpush.xpose.msra.mxu0 %v1231
      %1668 = vmatmul.f32.gmra.mxu0 %v1551
      %v1669 = vpop.f32.mrf.mxu0
      %v1670 = vadd.f32 %v1650, %v1669
      %1671 = vdwg.mxu0
      %1672 = vmatpush.xpose.msra.mxu0 %v1292
      %1673 = vmatpush.xpose.msra.mxu0 %v1290
      %1674 = vmatpush.xpose.msra.mxu0 %v1288
      %1675 = vmatpush.xpose.msra.mxu0 %v1286
      %1676 = vmatpush.xpose.msra.mxu0 %v1284
      %1677 = vmatpush.xpose.msra.mxu0 %v1282
      %1678 = vmatpush.xpose.msra.mxu0 %v1280
      %1679 = vmatpush.xpose.msra.mxu0 %v1278
      %1680 = vmatpush.xpose.msra.mxu0 %v1276
      %1681 = vmatpush.xpose.msra.mxu0 %v1274
      %1682 = vmatpush.xpose.msra.mxu0 %v1272
      %1683 = vmatpush.xpose.msra.mxu0 %v1270
      %1684 = vmatpush.xpose.msra.mxu0 %v1268
      %1685 = vmatpush.xpose.msra.mxu0 %v1266
      %1686 = vmatpush.xpose.msra.mxu0 %v1264
      %1687 = vmatpush.xpose.msra.mxu0 %v1262
      %1688 = vmatmul.f32.gmra.mxu0 %v1550
      %v1689 = vpop.f32.mrf.mxu0
      %v1690 = vadd.f32 0.0, %v1689
      %1691 = vdwg.mxu0
      %1692 = vmatpush.xpose.msra.mxu0 %v1293
      %1693 = vmatpush.xpose.msra.mxu0 %v1291
      %1694 = vmatpush.xpose.msra.mxu0 %v1289
      %1695 = vmatpush.xpose.msra.mxu0 %v1287
      %1696 = vmatpush.xpose.msra.mxu0 %v1285
      %1697 = vmatpush.xpose.msra.mxu0 %v1283
      %1698 = vmatpush.xpose.msra.mxu0 %v1281
      %1699 = vmatpush.xpose.msra.mxu0 %v1279
      %1700 = vmatpush.xpose.msra.mxu0 %v1277
      %1701 = vmatpush.xpose.msra.mxu0 %v1275
      %1702 = vmatpush.xpose.msra.mxu0 %v1273
      %1703 = vmatpush.xpose.msra.mxu0 %v1271
      %1704 = vmatpush.xpose.msra.mxu0 %v1269
      %1705 = vmatpush.xpose.msra.mxu0 %v1267
      %1706 = vmatpush.xpose.msra.mxu0 %v1265
      %1707 = vmatpush.xpose.msra.mxu0 %v1263
      %1708 = vmatmul.f32.gmra.mxu0 %v1551
      %v1709 = vpop.f32.mrf.mxu0
      %v1710 = vadd.f32 %v1690, %v1709
      %1711 = vdwg.mxu0
      %1712 = vmatpush.xpose.msra.mxu0 %v1324
      %1713 = vmatpush.xpose.msra.mxu0 %v1322
      %1714 = vmatpush.xpose.msra.mxu0 %v1320
      %1715 = vmatpush.xpose.msra.mxu0 %v1318
      %1716 = vmatpush.xpose.msra.mxu0 %v1316
      %1717 = vmatpush.xpose.msra.mxu0 %v1314
      %1718 = vmatpush.xpose.msra.mxu0 %v1312
      %1719 = vmatpush.xpose.msra.mxu0 %v1310
      %1720 = vmatpush.xpose.msra.mxu0 %v1308
      %1721 = vmatpush.xpose.msra.mxu0 %v1306
      %1722 = vmatpush.xpose.msra.mxu0 %v1304
      %1723 = vmatpush.xpose.msra.mxu0 %v1302
      %1724 = vmatpush.xpose.msra.mxu0 %v1300
      %1725 = vmatpush.xpose.msra.mxu0 %v1298
      %1726 = vmatpush.xpose.msra.mxu0 %v1296
      %1727 = vmatpush.xpose.msra.mxu0 %v1294
      %1728 = vmatmul.f32.gmra.mxu0 %v1550
      %v1729 = vpop.f32.mrf.mxu0
      %v1730 = vadd.f32 0.0, %v1729
      %1731 = vdwg.mxu0
      %1732 = vmatpush.xpose.msra.mxu0 %v1325
      %1733 = vmatpush.xpose.msra.mxu0 %v1323
      %1734 = vmatpush.xpose.msra.mxu0 %v1321
      %1735 = vmatpush.xpose.msra.mxu0 %v1319
      %1736 = vmatpush.xpose.msra.mxu0 %v1317
      %1737 = vmatpush.xpose.msra.mxu0 %v1315
      %1738 = vmatpush.xpose.msra.mxu0 %v1313
      %1739 = vmatpush.xpose.msra.mxu0 %v1311
      %1740 = vmatpush.xpose.msra.mxu0 %v1309
      %1741 = vmatpush.xpose.msra.mxu0 %v1307
      %1742 = vmatpush.xpose.msra.mxu0 %v1305
      %1743 = vmatpush.xpose.msra.mxu0 %v1303
      %1744 = vmatpush.xpose.msra.mxu0 %v1301
      %1745 = vmatpush.xpose.msra.mxu0 %v1299
      %1746 = vmatpush.xpose.msra.mxu0 %v1297
      %1747 = vmatpush.xpose.msra.mxu0 %v1295
      %1748 = vmatmul.f32.gmra.mxu0 %v1551
      %v1749 = vpop.f32.mrf.mxu0
      %v1750 = vadd.f32 %v1730, %v1749
      %1751 = vdwg.mxu0
      %1752 = vmatpush.xpose.msra.mxu0 %v1356
      %1753 = vmatpush.xpose.msra.mxu0 %v1354
      %1754 = vmatpush.xpose.msra.mxu0 %v1352
      %1755 = vmatpush.xpose.msra.mxu0 %v1350
      %1756 = vmatpush.xpose.msra.mxu0 %v1348
      %1757 = vmatpush.xpose.msra.mxu0 %v1346
      %1758 = vmatpush.xpose.msra.mxu0 %v1344
      %1759 = vmatpush.xpose.msra.mxu0 %v1342
      %1760 = vmatpush.xpose.msra.mxu0 %v1340
      %1761 = vmatpush.xpose.msra.mxu0 %v1338
      %1762 = vmatpush.xpose.msra.mxu0 %v1336
      %1763 = vmatpush.xpose.msra.mxu0 %v1334
      %1764 = vmatpush.xpose.msra.mxu0 %v1332
      %1765 = vmatpush.xpose.msra.mxu0 %v1330
      %1766 = vmatpush.xpose.msra.mxu0 %v1328
      %1767 = vmatpush.xpose.msra.mxu0 %v1326
      %1768 = vmatmul.f32.gmra.mxu0 %v1550
      %v1769 = vpop.f32.mrf.mxu0
      %v1770 = vadd.f32 0.0, %v1769
      %1771 = vdwg.mxu0
      %1772 = vmatpush.xpose.msra.mxu0 %v1357
      %1773 = vmatpush.xpose.msra.mxu0 %v1355
      %1774 = vmatpush.xpose.msra.mxu0 %v1353
      %1775 = vmatpush.xpose.msra.mxu0 %v1351
      %1776 = vmatpush.xpose.msra.mxu0 %v1349
      %1777 = vmatpush.xpose.msra.mxu0 %v1347
      %1778 = vmatpush.xpose.msra.mxu0 %v1345
      %1779 = vmatpush.xpose.msra.mxu0 %v1343
      %1780 = vmatpush.xpose.msra.mxu0 %v1341
      %1781 = vmatpush.xpose.msra.mxu0 %v1339
      %1782 = vmatpush.xpose.msra.mxu0 %v1337
      %1783 = vmatpush.xpose.msra.mxu0 %v1335
      %1784 = vmatpush.xpose.msra.mxu0 %v1333
      %1785 = vmatpush.xpose.msra.mxu0 %v1331
      %1786 = vmatpush.xpose.msra.mxu0 %v1329
      %1787 = vmatpush.xpose.msra.mxu0 %v1327
      %1788 = vmatmul.f32.gmra.mxu0 %v1551
      %v1789 = vpop.f32.mrf.mxu0
      %v1790 = vadd.f32 %v1770, %v1789
      %1791 = vdwg.mxu0
      %1792 = vmatpush.xpose.msra.mxu0 %v1388
      %1793 = vmatpush.xpose.msra.mxu0 %v1386
      %1794 = vmatpush.xpose.msra.mxu0 %v1384
      %1795 = vmatpush.xpose.msra.mxu0 %v1382
      %1796 = vmatpush.xpose.msra.mxu0 %v1380
      %1797 = vmatpush.xpose.msra.mxu0 %v1378
      %1798 = vmatpush.xpose.msra.mxu0 %v1376
      %1799 = vmatpush.xpose.msra.mxu0 %v1374
      %1800 = vmatpush.xpose.msra.mxu0 %v1372
      %1801 = vmatpush.xpose.msra.mxu0 %v1370
      %1802 = vmatpush.xpose.msra.mxu0 %v1368
      %1803 = vmatpush.xpose.msra.mxu0 %v1366
      %1804 = vmatpush.xpose.msra.mxu0 %v1364
      %1805 = vmatpush.xpose.msra.mxu0 %v1362
      %1806 = vmatpush.xpose.msra.mxu0 %v1360
      %1807 = vmatpush.xpose.msra.mxu0 %v1358
      %1808 = vmatmul.f32.gmra.mxu0 %v1550
      %v1809 = vpop.f32.mrf.mxu0
      %v1810 = vadd.f32 0.0, %v1809
      %1811 = vdwg.mxu0
      %1812 = vmatpush.xpose.msra.mxu0 %v1389
      %1813 = vmatpush.xpose.msra.mxu0 %v1387
      %1814 = vmatpush.xpose.msra.mxu0 %v1385
      %1815 = vmatpush.xpose.msra.mxu0 %v1383
      %1816 = vmatpush.xpose.msra.mxu0 %v1381
      %1817 = vmatpush.xpose.msra.mxu0 %v1379
      %1818 = vmatpush.xpose.msra.mxu0 %v1377
      %1819 = vmatpush.xpose.msra.mxu0 %v1375
      %1820 = vmatpush.xpose.msra.mxu0 %v1373
      %1821 = vmatpush.xpose.msra.mxu0 %v1371
      %1822 = vmatpush.xpose.msra.mxu0 %v1369
      %1823 = vmatpush.xpose.msra.mxu0 %v1367
      %1824 = vmatpush.xpose.msra.mxu0 %v1365
      %1825 = vmatpush.xpose.msra.mxu0 %v1363
      %1826 = vmatpush.xpose.msra.mxu0 %v1361
      %1827 = vmatpush.xpose.msra.mxu0 %v1359
      %1828 = vmatmul.f32.gmra.mxu0 %v1551
      %v1829 = vpop.f32.mrf.mxu0
      %v1830 = vadd.f32 %v1810, %v1829
      %1831 = vdwg.mxu0
      %1832 = vmatpush.xpose.msra.mxu0 %v1420
      %1833 = vmatpush.xpose.msra.mxu0 %v1418
      %1834 = vmatpush.xpose.msra.mxu0 %v1416
      %1835 = vmatpush.xpose.msra.mxu0 %v1414
      %1836 = vmatpush.xpose.msra.mxu0 %v1412
      %1837 = vmatpush.xpose.msra.mxu0 %v1410
      %1838 = vmatpush.xpose.msra.mxu0 %v1408
      %1839 = vmatpush.xpose.msra.mxu0 %v1406
      %1840 = vmatpush.xpose.msra.mxu0 %v1404
      %1841 = vmatpush.xpose.msra.mxu0 %v1402
      %1842 = vmatpush.xpose.msra.mxu0 %v1400
      %1843 = vmatpush.xpose.msra.mxu0 %v1398
      %1844 = vmatpush.xpose.msra.mxu0 %v1396
      %1845 = vmatpush.xpose.msra.mxu0 %v1394
      %1846 = vmatpush.xpose.msra.mxu0 %v1392
      %1847 = vmatpush.xpose.msra.mxu0 %v1390
      %1848 = vmatmul.f32.gmra.mxu0 %v1550
      %v1849 = vpop.f32.mrf.mxu0
      %v1850 = vadd.f32 0.0, %v1849
      %1851 = vdwg.mxu0
      %1852 = vmatpush.xpose.msra.mxu0 %v1421
      %1853 = vmatpush.xpose.msra.mxu0 %v1419
      %1854 = vmatpush.xpose.msra.mxu0 %v1417
      %1855 = vmatpush.xpose.msra.mxu0 %v1415
      %1856 = vmatpush.xpose.msra.mxu0 %v1413
      %1857 = vmatpush.xpose.msra.mxu0 %v1411
      %1858 = vmatpush.xpose.msra.mxu0 %v1409
      %1859 = vmatpush.xpose.msra.mxu0 %v1407
      %1860 = vmatpush.xpose.msra.mxu0 %v1405
      %1861 = vmatpush.xpose.msra.mxu0 %v1403
      %1862 = vmatpush.xpose.msra.mxu0 %v1401
      %1863 = vmatpush.xpose.msra.mxu0 %v1399
      %1864 = vmatpush.xpose.msra.mxu0 %v1397
      %1865 = vmatpush.xpose.msra.mxu0 %v1395
      %1866 = vmatpush.xpose.msra.mxu0 %v1393
      %1867 = vmatpush.xpose.msra.mxu0 %v1391
      %1868 = vmatmul.f32.gmra.mxu0 %v1551
      %v1869 = vpop.f32.mrf.mxu0
      %v1870 = vadd.f32 %v1850, %v1869
      %1871 = vdwg.mxu0
      %1872 = vmatpush.xpose.msra.mxu0 %v1452
      %1873 = vmatpush.xpose.msra.mxu0 %v1450
      %1874 = vmatpush.xpose.msra.mxu0 %v1448
      %1875 = vmatpush.xpose.msra.mxu0 %v1446
      %1876 = vmatpush.xpose.msra.mxu0 %v1444
      %1877 = vmatpush.xpose.msra.mxu0 %v1442
      %1878 = vmatpush.xpose.msra.mxu0 %v1440
      %1879 = vmatpush.xpose.msra.mxu0 %v1438
      %1880 = vmatpush.xpose.msra.mxu0 %v1436
      %1881 = vmatpush.xpose.msra.mxu0 %v1434
      %1882 = vmatpush.xpose.msra.mxu0 %v1432
      %1883 = vmatpush.xpose.msra.mxu0 %v1430
      %1884 = vmatpush.xpose.msra.mxu0 %v1428
      %1885 = vmatpush.xpose.msra.mxu0 %v1426
      %1886 = vmatpush.xpose.msra.mxu0 %v1424
      %1887 = vmatpush.xpose.msra.mxu0 %v1422
      %1888 = vmatmul.f32.gmra.mxu0 %v1550
      %v1889 = vpop.f32.mrf.mxu0
      %v1890 = vadd.f32 0.0, %v1889
      %1891 = vdwg.mxu0
      %1892 = vmatpush.xpose.msra.mxu0 %v1453
      %1893 = vmatpush.xpose.msra.mxu0 %v1451
      %1894 = vmatpush.xpose.msra.mxu0 %v1449
      %1895 = vmatpush.xpose.msra.mxu0 %v1447
      %1896 = vmatpush.xpose.msra.mxu0 %v1445
      %1897 = vmatpush.xpose.msra.mxu0 %v1443
      %1898 = vmatpush.xpose.msra.mxu0 %v1441
      %1899 = vmatpush.xpose.msra.mxu0 %v1439
      %1900 = vmatpush.xpose.msra.mxu0 %v1437
      %1901 = vmatpush.xpose.msra.mxu0 %v1435
      %1902 = vmatpush.xpose.msra.mxu0 %v1433
      %1903 = vmatpush.xpose.msra.mxu0 %v1431
      %1904 = vmatpush.xpose.msra.mxu0 %v1429
      %1905 = vmatpush.xpose.msra.mxu0 %v1427
      %1906 = vmatpush.xpose.msra.mxu0 %v1425
      %1907 = vmatpush.xpose.msra.mxu0 %v1423
      %1908 = vmatmul.f32.gmra.mxu0 %v1551
      %v1909 = vpop.f32.mrf.mxu0
      %v1910 = vadd.f32 %v1890, %v1909
      %1911 = vdwg.mxu0
      %1912 = vmatpush.xpose.msra.mxu0 %v1484
      %1913 = vmatpush.xpose.msra.mxu0 %v1482
      %1914 = vmatpush.xpose.msra.mxu0 %v1480
      %1915 = vmatpush.xpose.msra.mxu0 %v1478
      %1916 = vmatpush.xpose.msra.mxu0 %v1476
      %1917 = vmatpush.xpose.msra.mxu0 %v1474
      %1918 = vmatpush.xpose.msra.mxu0 %v1472
      %1919 = vmatpush.xpose.msra.mxu0 %v1470
      %1920 = vmatpush.xpose.msra.mxu0 %v1468
      %1921 = vmatpush.xpose.msra.mxu0 %v1466
      %1922 = vmatpush.xpose.msra.mxu0 %v1464
      %1923 = vmatpush.xpose.msra.mxu0 %v1462
      %1924 = vmatpush.xpose.msra.mxu0 %v1460
      %1925 = vmatpush.xpose.msra.mxu0 %v1458
      %1926 = vmatpush.xpose.msra.mxu0 %v1456
      %1927 = vmatpush.xpose.msra.mxu0 %v1454
      %1928 = vmatmul.f32.gmra.mxu0 %v1550
      %v1929 = vpop.f32.mrf.mxu0
      %v1930 = vadd.f32 0.0, %v1929
      %1931 = vdwg.mxu0
      %1932 = vmatpush.xpose.msra.mxu0 %v1485
      %1933 = vmatpush.xpose.msra.mxu0 %v1483
      %1934 = vmatpush.xpose.msra.mxu0 %v1481
      %1935 = vmatpush.xpose.msra.mxu0 %v1479
      %1936 = vmatpush.xpose.msra.mxu0 %v1477
      %1937 = vmatpush.xpose.msra.mxu0 %v1475
      %1938 = vmatpush.xpose.msra.mxu0 %v1473
      %1939 = vmatpush.xpose.msra.mxu0 %v1471
      %1940 = vmatpush.xpose.msra.mxu0 %v1469
      %1941 = vmatpush.xpose.msra.mxu0 %v1467
      %1942 = vmatpush.xpose.msra.mxu0 %v1465
      %1943 = vmatpush.xpose.msra.mxu0 %v1463
      %1944 = vmatpush.xpose.msra.mxu0 %v1461
      %1945 = vmatpush.xpose.msra.mxu0 %v1459
      %1946 = vmatpush.xpose.msra.mxu0 %v1457
      %1947 = vmatpush.xpose.msra.mxu0 %v1455
      %1948 = vmatmul.f32.gmra.mxu0 %v1551
      %v1949 = vpop.f32.mrf.mxu0
      %v1950 = vadd.f32 %v1930, %v1949
      %1951 = vdwg.mxu0
      %1952 = vmatpush.xpose.msra.mxu0 %v1516
      %1953 = vmatpush.xpose.msra.mxu0 %v1514
      %1954 = vmatpush.xpose.msra.mxu0 %v1512
      %1955 = vmatpush.xpose.msra.mxu0 %v1510
      %1956 = vmatpush.xpose.msra.mxu0 %v1508
      %1957 = vmatpush.xpose.msra.mxu0 %v1506
      %1958 = vmatpush.xpose.msra.mxu0 %v1504
      %1959 = vmatpush.xpose.msra.mxu0 %v1502
      %1960 = vmatpush.xpose.msra.mxu0 %v1500
      %1961 = vmatpush.xpose.msra.mxu0 %v1498
      %1962 = vmatpush.xpose.msra.mxu0 %v1496
      %1963 = vmatpush.xpose.msra.mxu0 %v1494
      %1964 = vmatpush.xpose.msra.mxu0 %v1492
      %1965 = vmatpush.xpose.msra.mxu0 %v1490
      %1966 = vmatpush.xpose.msra.mxu0 %v1488
      %1967 = vmatpush.xpose.msra.mxu0 %v1486
      %1968 = vmatmul.f32.gmra.mxu0 %v1550
      %v1969 = vpop.f32.mrf.mxu0
      %v1970 = vadd.f32 0.0, %v1969
      %1971 = vdwg.mxu0
      %1972 = vmatpush.xpose.msra.mxu0 %v1517
      %1973 = vmatpush.xpose.msra.mxu0 %v1515
      %1974 = vmatpush.xpose.msra.mxu0 %v1513
      %1975 = vmatpush.xpose.msra.mxu0 %v1511
      %1976 = vmatpush.xpose.msra.mxu0 %v1509
      %1977 = vmatpush.xpose.msra.mxu0 %v1507
      %1978 = vmatpush.xpose.msra.mxu0 %v1505
      %1979 = vmatpush.xpose.msra.mxu0 %v1503
      %1980 = vmatpush.xpose.msra.mxu0 %v1501
      %1981 = vmatpush.xpose.msra.mxu0 %v1499
      %1982 = vmatpush.xpose.msra.mxu0 %v1497
      %1983 = vmatpush.xpose.msra.mxu0 %v1495
      %1984 = vmatpush.xpose.msra.mxu0 %v1493
      %1985 = vmatpush.xpose.msra.mxu0 %v1491
      %1986 = vmatpush.xpose.msra.mxu0 %v1489
      %1987 = vmatpush.xpose.msra.mxu0 %v1487
      %1988 = vmatmul.f32.gmra.mxu0 %v1551
      %v1989 = vpop.f32.mrf.mxu0
      %v1990 = vadd.f32 %v1970, %v1989
      %1991 = vdwg.mxu0
      %1992 = vmatpush.xpose.msra.mxu0 %v1548
      %1993 = vmatpush.xpose.msra.mxu0 %v1546
      %1994 = vmatpush.xpose.msra.mxu0 %v1544
      %1995 = vmatpush.xpose.msra.mxu0 %v1542
      %1996 = vmatpush.xpose.msra.mxu0 %v1540
      %1997 = vmatpush.xpose.msra.mxu0 %v1538
      %1998 = vmatpush.xpose.msra.mxu0 %v1536
      %1999 = vmatpush.xpose.msra.mxu0 %v1534
      %2000 = vmatpush.xpose.msra.mxu0 %v1532
      %2001 = vmatpush.xpose.msra.mxu0 %v1530
      %2002 = vmatpush.xpose.msra.mxu0 %v1528
      %2003 = vmatpush.xpose.msra.mxu0 %v1526
      %2004 = vmatpush.xpose.msra.mxu0 %v1524
      %2005 = vmatpush.xpose.msra.mxu0 %v1522
      %2006 = vmatpush.xpose.msra.mxu0 %v1520
      %2007 = vmatpush.xpose.msra.mxu0 %v1518
      %2008 = vmatmul.f32.gmra.mxu0 %v1550
      %v2009 = vpop.f32.mrf.mxu0
      %v2010 = vadd.f32 0.0, %v2009
      %2011 = vdwg.mxu0
      %2012 = vmatpush.xpose.msra.mxu0 %v1549
      %2013 = vmatpush.xpose.msra.mxu0 %v1547
      %2014 = vmatpush.xpose.msra.mxu0 %v1545
      %2015 = vmatpush.xpose.msra.mxu0 %v1543
      %2016 = vmatpush.xpose.msra.mxu0 %v1541
      %2017 = vmatpush.xpose.msra.mxu0 %v1539
      %2018 = vmatpush.xpose.msra.mxu0 %v1537
      %2019 = vmatpush.xpose.msra.mxu0 %v1535
      %2020 = vmatpush.xpose.msra.mxu0 %v1533
      %2021 = vmatpush.xpose.msra.mxu0 %v1531
      %2022 = vmatpush.xpose.msra.mxu0 %v1529
      %2023 = vmatpush.xpose.msra.mxu0 %v1527
      %2024 = vmatpush.xpose.msra.mxu0 %v1525
      %2025 = vmatpush.xpose.msra.mxu0 %v1523
      %2026 = vmatpush.xpose.msra.mxu0 %v1521
      %2027 = vmatpush.xpose.msra.mxu0 %v1519
      %2028 = vmatmul.f32.gmra.mxu0 %v1551
      %v2029 = vpop.f32.mrf.mxu0
      %v2030 = vadd.f32 %v2010, %v2029
      %2031 = vdwg.mxu0
      %v2032 = vld [vmem:[%s229] sm:$0xff]
      %v2033 = vld [vmem:[%s229 + $0x8] sm:$0xff]
      %v2034 = vld [vmem:[%s229 + $0x10] sm:$0xff]
      %v2035 = vld [vmem:[%s229 + $0x18] sm:$0xff]
      %v2036 = vld [vmem:[%s229 + $0x20] sm:$0xff]
      %v2037 = vld [vmem:[%s229 + $0x28] sm:$0xff]
      %v2038 = vld [vmem:[%s229 + $0x30] sm:$0xff]
      %v2039 = vld [vmem:[%s229 + $0x38] sm:$0xff]
      %v2040 = vld [vmem:[%s229 + $0x40] sm:$0xff]
      %v2041 = vld [vmem:[%s229 + $0x48] sm:$0xff]
      %v2042 = vld [vmem:[%s229 + $0x50] sm:$0xff]
      %v2043 = vld [vmem:[%s229 + $0x58] sm:$0xff]
      %v2044 = vadd.f32 %v2032, %v1590
      %v2045 = vadd.f32 %v2033, %v1630
      %v2046 = vadd.f32 %v2034, %v1670
      %v2047 = vadd.f32 %v2035, %v1710
      %v2048 = vadd.f32 %v2036, %v1750
      %v2049 = vadd.f32 %v2037, %v1790
      %v2050 = vadd.f32 %v2038, %v1830
      %v2051 = vadd.f32 %v2039, %v1870
      %v2052 = vadd.f32 %v2040, %v1910
      %v2053 = vadd.f32 %v2041, %v1950
      %v2054 = vadd.f32 %v2042, %v1990
      %v2055 = vadd.f32 %v2043, %v2030
      %2056 = vst [vmem:[%s229] sm:$0xff] %v2044
      %2057 = vst [vmem:[%s229 + $0x8] sm:$0xff] %v2045
      %2058 = vst [vmem:[%s229 + $0x10] sm:$0xff] %v2046
      %2059 = vst [vmem:[%s229 + $0x18] sm:$0xff] %v2047
      %2060 = vst [vmem:[%s229 + $0x20] sm:$0xff] %v2048
      %2061 = vst [vmem:[%s229 + $0x28] sm:$0xff] %v2049
      %2062 = vst [vmem:[%s229 + $0x30] sm:$0xff] %v2050
      %2063 = vst [vmem:[%s229 + $0x38] sm:$0xff] %v2051
      %2064 = vst [vmem:[%s229 + $0x40] sm:$0xff] %v2052
      %2065 = vst [vmem:[%s229 + $0x48] sm:$0xff] %v2053
      %2066 = vst [vmem:[%s229 + $0x50] sm:$0xff] %v2054
      %2067 = vst [vmem:[%s229 + $0x58] sm:$0xff] %v2055
      %s2068 = smul.u32 12, %s19
      %p2069 = scmp.lt.s32.totalorder %s18, 0
      %s2070 = scalar_select %p2069, %s18, 0
      %p2071 = scmp.lt.s32.totalorder %s2068, 71
      %s2072 = scalar_select %p2071, %s2068, 71
      %s2073 = smul.addr %s2070, 72
      %s2074 = sadd.s32 %s2072, %s2073
      %s2075 = smul.addr %s2074, 8
      %s2076 = scalar_lea.vmem %s2, %s2075
      // Predicated region
      $region33: #{dht_forward.1} parent=27 // pred_check
        %p2077 = pneg %p108
      $region34: #{dht_forward.1} parent=27 // pred_check_branch
        %2079 = sbr.rel (%p2077) target = $region36
      $region35: #{dht_forward.1} parent=27 // pred_region
        %s2080 = smul.u32 12, %s19
      $region36: #{dht_forward.1} parent=27 // pred_fallthru
        _
    $region28: #{dht_forward.1} parent=5 // pred_fallthru
      _
    %p2081 = scmp.le.s32.totalorder 2, %s8
    // Predicated region
    $region37: #{dht_forward.1} parent=5 // pred_check
      %p2082 = pneg %p2081
    $region38: #{dht_forward.1} parent=5 // pred_check_branch
      %2084 = sbr.rel (%p2082) target = $region40
    $region39: #{dht_forward.1} parent=5 // pred_region
      %s2085 = ssub.s32 %s8, 2
      // Predicated region
      $region41: #{dht_forward.1} parent=39 // pred_check
        %p2086 = pneg %p114
      $region42: #{dht_forward.1} parent=39 // pred_check_branch
        %2088 = sbr.rel (%p2086) target = $region44
      $region43: #{dht_forward.1} parent=39 // pred_region
        %s2089 = smul.u32 12, %s22
        %p2090 = scmp.lt.s32.totalorder %s21, 0
        %s2091 = scalar_select %p2090, %s21, 0
        %p2092 = scmp.lt.s32.totalorder %s2089, 71
        %s2093 = scalar_select %p2092, %s2089, 71
        %s2094 = smul.addr %s2091, 72
        %s2095 = sadd.s32 %s2093, %s2094
        %s2096 = smul.addr %s2095, 8
        %s2097 = scalar_lea.vmem %s2, %s2096
      $region44: #{dht_forward.1} parent=39 // pred_fallthru
        _
    $region40: #{dht_forward.1} parent=5 // pred_fallthru
      _
  $region6: #{dht_forward.1} parent=0 // loop_footer
    %s12 = sadd.s32 1, %s8
  $region7: #{dht_forward.1} parent=0 // loop_footer_branch
    %7 = sbr.rel target = $region3
  $region8: #{dht_forward.1} parent=0 // loop_exit
    _

</llo_original>
